<compile_context>
chip_gen: v6e
topology: v6e:2x2x1
jax: 0.10.0
libtpu: 0.0.40
codegen_flags: <defaults>
</compile_context>

<pallas_src>
import functools

import jax
import jax.numpy as jnp
from jax import lax
from jax.experimental import pallas as pl
from jax.experimental.pallas import tpu as pltpu

N_STATE = 8      # n_state
N_CTRL = 4       # n_ctrl
HORIZON = 8      # model.horizon
SAMPLES = 8      # samples (the "B1" dim) -- 8 fills the sublanes for free


def _mc_svg_kernel(slab_ref, ktbig_ref, bigm_ref, out_ref, z_scr, ga_scr, *, H, ns, nc):
    nz = ns + nc
    B = slab_ref.shape[0]
    inv_b = 1.0 / B
    NXH, NAH, NZH = H * ns, H * nc, H * nz          # 64, 32, 96
    ZW = z_scr.shape[1]                             # 128 (lane-dense)
    GW = ga_scr.shape[1]                            # 40  (sublane-dense output rows)

    # packed-slab column offsets (must match the wrapper layout)
    off_mx = 0                      # Mx_t      at [:, off_mx + t*ns : +ns]
    off_b2 = NXH                    # b2_t      at [:, off_b2 + t*ns : +ns]
    off_g = 2 * NXH                 # G_t       at [:, off_g  + t*nz : +nz]
    off_x0 = off_g + NZH            # x0        at [:, off_x0 : +ns]
    off_k = off_x0 + ns             # k (flat)  at [:, off_k  : +NAH]
    off_bias = off_k + NAH          # [cz | -czP] at [:, off_bias : +NZH+NXH]

    def mm(x, w):   # x @ w, contraction (1,)x(0,) -> no in-kernel transposes
        return lax.dot_general(x, w, (((1,), (0,)), ((), ())),
                               preferred_element_type=jnp.float32)

    def tmm(x, w):  # x.T @ w (contract the batch/sublane dim) -- batched outer product
        return lax.dot_general(x, w, (((0,), (0,)), ((), ())),
                               preferred_element_type=jnp.float32)

    # ---- forward state chain: the ONLY chained matmul per step (7 total) ----
    x = slab_ref[:, off_x0:off_x0 + ns]
    for t in range(H):
        z_scr[:, t * ns:(t + 1) * ns] = x
        if t + 1 < H:   # x_H is never used (no terminal cost)
            x = (mm(x, slab_ref[:, off_mx + t * ns:off_mx + (t + 1) * ns])
                 + slab_ref[:, off_b2 + t * ns:off_b2 + (t + 1) * ns])

    # ---- batched off-chain math ----
    # actions for all t in one matmul against block-diag(K_t^T)
    X = z_scr[:, 0:NXH]
    a_all = mm(X, ktbig_ref[...]) + slab_ref[:, off_k:off_k + NAH]
    z_scr[:, NXH:NXH + NAH] = a_all
    z_scr[:, NZH:ZW] = jnp.zeros((B, ZW - NZH), jnp.float32)   # zero padding lanes
    z_scr[:, NZH:NZH + 1] = jnp.ones((B, 1), jnp.float32)      # ones column (for gk / mc)

    Za = z_scr[...]                                  # (B, 128) = [X | A | 1 | 0...]
    Z = Za[:, 0:NZH]                                 # (B, 96)
    bias = slab_ref[:, off_bias:off_bias + NZH + NXH]            # (B, 160) = [cz | -czP]
    # W[:, :96]  = s_t + cz_t  (all t),  W[:, 96:160] = d_t = -(s_t + cz_t) @ [I; K_t]  (all t)
    W = mm(Z, bigm_ref[...]) + bias
    cz = bias[:, 0:NZH]
    # per-sample cost q_b = sum_t (0.5 z_t.s_t + z_t.cz_t);  return_b = -q_b
    q = jnp.sum(Z * (0.5 * (W[:, 0:NZH] + cz)), axis=1, keepdims=True)

    ga_scr[:, NAH:GW] = jnp.zeros((B, GW - NAH), jnp.float32)
    ga_scr[:, NAH:NAH + 1] = q

    # ---- adjoint chain == autograd.grad(mc, (K, k)); one chained matmul per step (7 total) --
    t = H - 1
    ga_scr[:, t * nc:(t + 1) * nc] = -W[:, NXH + t * nc:NXH + (t + 1) * nc]
    gx = W[:, NZH + t * ns:NZH + (t + 1) * ns]       # g_x_{H-1} = d_{H-1}
    for t in range(H - 2, -1, -1):
        w_t = mm(gx, slab_ref[:, off_g + t * nz:off_g + (t + 1) * nz])   # g_x_{t+1} @ G_t
        ga_scr[:, t * nc:(t + 1) * nc] = (w_t[:, ns:nz]
                                          - W[:, NXH + t * nc:NXH + (t + 1) * nc])
        if t > 0:
            gx = w_t[:, 0:ns] + W[:, NZH + t * ns:NZH + (t + 1) * ns]    # g_x_t

    # ---- one fused output matmul + one lane-dense store ----
    # R[t*nc+i, t*ns+j] = dmc/dK_t[i,j];  R[t*nc+i, 96] = dmc/dk_t[i];  R[32, 96] = -mc
    out_ref[...] = tmm(ga_scr[...], Za) * inv_b


def monte_carlo_svg(params, eps0, eps):
    """Returns (mc_performance, (grad_K, grad_k)) like MonteCarloSVG.forward."""
    (mu, Li, K, k, Fx, Fa, f, Lt, Cxx, Cxa, Caa, cx, ca) = params
    H, nc, ns = K.shape
    B = eps0.shape[0]
    nz = ns + nc
    hi = lax.Precision.HIGHEST
    f32 = jnp.float32

    # Adjoint assumes a symmetric quadratic cost; symmetrizing leaves the reward unchanged.
    Cxx = 0.5 * (Cxx + jnp.swapaxes(Cxx, -1, -2))
    Caa = 0.5 * (Caa + jnp.swapaxes(Caa, -1, -2))

    def bd(m):                      # (H, r, c) -> block-diagonal (H*r, H*c)
        Hh, r, c = m.shape
        eye = jnp.eye(Hh, dtype=m.dtype)
        return jnp.einsum("tij,ts->tisj", m, eye).reshape(Hh * r, Hh * c)

    def flat(m):                    # (H, 8, c) -> (8, H*c), piece t at lanes [t*c, (t+1)*c)
        return jnp.transpose(m, (1, 0, 2)).reshape(m.shape[1], -1)

    # One-off XLA precompute (off the kernel's critical path), all at f32-exact precision.
    # Closed-loop fusions: Mx_t = (Fx_t + Fa_t K_t)^T,  G_t = [Fx_t + Fa_t K_t | Fa_t]
    M = Fx + jnp.einsum("tnc,tcm->tnm", Fa, K, precision=hi)            # (H, ns, ns)
    Mx = jnp.swapaxes(M, -1, -2)
    G = jnp.concatenate([M, Fa], axis=-1)                               # (H, ns, nz)
    b2 = (jnp.einsum("toc,tnc->ton", k, Fa, precision=hi) + f
          + jnp.einsum("tbn,tmn->tbm", eps, Lt, precision=hi))          # (H, B, ns)
    x0 = mu + jnp.einsum("bn,mn->bm", eps0, Li, precision=hi)           # (B, ns)

    # Block-diagonal matrices for the batched off-chain matmuls (z layout = [x_0..x_7 | a_0..a_7])
    ktbig = bd(jnp.swapaxes(K, -1, -2))                                 # (64, 32)
    CzBig = jnp.concatenate(
        [jnp.concatenate([bd(Cxx), bd(Cxa)], axis=1),
         jnp.concatenate([bd(jnp.swapaxes(Cxa, -1, -2)), bd(Caa)], axis=1)], axis=0)  # (96, 96)
    PzTBig = jnp.concatenate([jnp.eye(H * ns, dtype=f32), bd(K)], axis=0)             # (96, 64)
    CP = jnp.matmul(CzBig, PzTBig, precision=hi)                        # (96, 64)
    cz_all = jnp.concatenate([cx.reshape(1, H * ns), ca.reshape(1, H * nc)], axis=1)  # (1, 96)
    czP = jnp.matmul(cz_all, PzTBig, precision=hi)                      # (1, 64)
    bigm = jnp.concatenate([CzBig, -CP], axis=1)                        # (96, 160)

    # One lane-packed per-step input slab (8 sublanes): [Mx | b2 | G | x0 | k | cz,-czP]
    bias = jnp.concatenate([cz_all, -czP], axis=1)                      # (1, 160)
    slab = jnp.concatenate(
        [flat(Mx), flat(b2), flat(G), x0,
         jnp.broadcast_to(k.reshape(1, H * nc), (B, H * nc)),
         jnp.broadcast_to(bias, (B, bias.shape[1]))], axis=1)           # (8, 424)

    vmem = pl.BlockSpec(memory_space=pltpu.MemorySpace.VMEM)
    out_rows, out_cols = H * nc + 8, 128                                # (40, 128) lane-dense
    R = pl.pallas_call(
        functools.partial(_mc_svg_kernel, H=H, ns=ns, nc=nc),
        out_shape=jax.ShapeDtypeStruct((out_rows, out_cols), f32),
        in_specs=[vmem, vmem, vmem],
        out_specs=vmem,
        scratch_shapes=[pltpu.VMEM((B, out_cols), f32),   # Za = [X | A | 1 | 0-pad]
                        pltpu.VMEM((B, out_rows), f32)],  # GAa = [g_a | q | 0-pad]
    )(slab, ktbig, bigm)

    # Unpack the single output slab.
    mc = -R[H * nc, H * nz]
    gk = R[:H * nc, H * nz].reshape(H, nc)
    RK = R[:H * nc, :H * ns].reshape(H, nc, H, ns)
    gK = jnp.stack([RK[t, :, t, :] for t in range(H)], axis=0)
    return mc, (gK, gk)


def init_params(key):
    """Deterministic synthetic policy + env-model parameters."""
    ks = jax.random.split(key, 11)
    eye_s = jnp.eye(N_STATE, dtype=jnp.float32)
    eye_c = jnp.eye(N_CTRL, dtype=jnp.float32)
    mu = 0.5 * jax.random.normal(ks[0], (1, N_STATE), jnp.float32)
    Li = 0.2 * eye_s                                                   # init scale_tril
    K = 0.2 * jax.random.normal(ks[1], (HORIZON, N_CTRL, N_STATE), jnp.float32)
    k = 0.1 * jax.random.normal(ks[2], (HORIZON, 1, N_CTRL), jnp.float32)
    Fx = 0.7 * eye_s[None] + 0.05 * jax.random.normal(
        ks[3], (HORIZON, N_STATE, N_STATE), jnp.float32)
    Fa = 0.2 * jax.random.normal(ks[4], (HORIZON, N_STATE, N_CTRL), jnp.float32)
    f = 0.05 * jax.random.normal(ks[5], (HORIZON, 1, N_STATE), jnp.float32)
    Lt = 0.1 * jnp.tile(eye_s[None], (HORIZON, 1, 1))                  # trans scale_tril
    Mxx = jax.random.normal(ks[6], (HORIZON, N_STATE, N_STATE), jnp.float32)
    Cxx = 0.1 * (Mxx + jnp.swapaxes(Mxx, -1, -2)) + 0.5 * eye_s[None]  # symmetric
    Cxa = 0.1 * jax.random.normal(ks[7], (HORIZON, N_STATE, N_CTRL), jnp.float32)
    Maa = jax.random.normal(ks[8], (HORIZON, N_CTRL, N_CTRL), jnp.float32)
    Caa = 0.1 * (Maa + jnp.swapaxes(Maa, -1, -2)) + 0.5 * eye_c[None]  # symmetric
    cx = 0.1 * jax.random.normal(ks[9], (HORIZON, 1, N_STATE), jnp.float32)
    ca = 0.1 * jax.random.normal(ks[10], (HORIZON, 1, N_CTRL), jnp.float32)
    return (mu, Li, K, k, Fx, Fa, f, Lt, Cxx, Cxa, Caa, cx, ca)


def reference(params, eps0, eps):
    """Pure-JAX rollout + jax.grad, mirroring MonteCarloSVG.forward (f32-exact matmuls)."""
    (mu, Li, K0, k0, Fx, Fa, f, Lt, Cxx, Cxa, Caa, cx, ca) = params
    B = eps0.shape[0]
    hi = lax.Precision.HIGHEST

    def value(K, kk):
        x = mu + jnp.matmul(eps0, Li.T, precision=hi)
        total = 0.0
        for t in range(HORIZON):
            a = jnp.matmul(x, K[t].T, precision=hi) + kk[t]
            quad = (jnp.sum(x * jnp.matmul(x, Cxx[t], precision=hi), -1)
                    + 2.0 * jnp.sum(a * jnp.matmul(x, Cxa[t], precision=hi), -1)
                    + jnp.sum(a * jnp.matmul(a, Caa[t], precision=hi), -1))
            lin = jnp.sum(x * cx[t], -1) + jnp.sum(a * ca[t], -1)
            total = total + jnp.sum(-0.5 * quad - lin)
            x = (jnp.matmul(x, Fx[t].T, precision=hi)
                 + jnp.matmul(a, Fa[t].T, precision=hi)
                 + f[t] + jnp.matmul(eps[t], Lt[t].T, precision=hi))
        return total / B

    mc = value(K0, k0)
    gK, gk = jax.grad(value, argnums=(0, 1))(K0, k0)
    return mc, gK, gk[:, 0, :]


if __name__ == "__main__":
    key = jax.random.PRNGKey(0)
    pkey, nkey = jax.random.split(key)
    params = init_params(pkey)
    n0, n1 = jax.random.split(nkey)
    # Reparameterization noise (the stochastic part of rsample_trajectory).
    eps0 = jax.random.normal(n0, (SAMPLES, N_STATE), jnp.float32)
    eps = jax.random.normal(n1, (HORIZON, SAMPLES, N_STATE), jnp.float32)

    mc, (gK, gk) = jax.jit(monte_carlo_svg)(params, eps0, eps)
    jax.block_until_ready((mc, gK, gk))

    # Kernel matmuls run at default MXU precision (single-pass bf16, f32 accumulate);
    # the reference uses f32-"highest", so allow ~1-2% tolerance.
    mc_r, gK_r, gk_r = reference(params, eps0, eps)
    assert jnp.allclose(mc, mc_r, rtol=2e-2, atol=2e-2), (mc, mc_r)
    assert jnp.allclose(gK, gK_r, rtol=2e-2, atol=2e-2)
    assert jnp.allclose(gk, gk_r, rtol=2e-2, atol=2e-2)
    print("KERNEL_OK")
</pallas_src>

<mosaic_0001>
module attributes {stable_mosaic.version = 11 : i64} {
  func.func @_mc_svg_kernel(%arg0: memref<8x424xf32, #tpu.memory_space<vmem>>, %arg1: memref<64x32xf32, #tpu.memory_space<vmem>>, %arg2: memref<96x160xf32, #tpu.memory_space<vmem>>, %arg3: memref<40x128xf32, #tpu.memory_space<vmem>>, %arg4: memref<8x128xf32, #tpu.memory_space<vmem>>, %arg5: memref<8x40xf32, #tpu.memory_space<vmem>>) attributes {dimension_semantics = [], scalar_prefetch = 0 : i64, scratch_operands = 2 : i64, tpu.core_type = #tpu.core_type<tc>} {
    %c0 = arith.constant 0 : index
    %c224 = arith.constant 224 : index
    %0 = vector.load %arg0[%c0, %c224] : memref<8x424xf32, #tpu.memory_space<vmem>>, vector<8x8xf32>
    %c0_0 = arith.constant 0 : index
    %c0_1 = arith.constant 0 : index
    %1 = vector.load %arg4[%c0_0, %c0_1] : memref<8x128xf32, #tpu.memory_space<vmem>>, vector<8x8xf32>
    tpu.vector_store %arg4[%c0_0, %c0_1], %0 {strides = array<i32>} : memref<8x128xf32, #tpu.memory_space<vmem>>, vector<8x8xf32>,
    %c0_2 = arith.constant 0 : index
    %c0_3 = arith.constant 0 : index
    %2 = vector.load %arg0[%c0_2, %c0_3] : memref<8x424xf32, #tpu.memory_space<vmem>>, vector<8x8xf32>
    %cst = arith.constant dense<0.000000e+00> : vector<8x8xf32>
    %3 = tpu.matmul %0, %2, %cst {dimension_numbers = #tpu.dot_dimension_numbers<[1], [0], [0], [1], [0, 0, 1, 1], [], []>} : vector<8x8xf32>, vector<8x8xf32>, vector<8x8xf32> -> vector<8x8xf32>
    %c0_4 = arith.constant 0 : index
    %c64 = arith.constant 64 : index
    %4 = vector.load %arg0[%c0_4, %c64] : memref<8x424xf32, #tpu.memory_space<vmem>>, vector<8x8xf32>
    %5 = arith.addf %3, %4 : vector<8x8xf32>
    %c0_5 = arith.constant 0 : index
    %c8 = arith.constant 8 : index
    %6 = vector.load %arg4[%c0_5, %c8] : memref<8x128xf32, #tpu.memory_space<vmem>>, vector<8x8xf32>
    tpu.vector_store %arg4[%c0_5, %c8], %5 {strides = array<i32>} : memref<8x128xf32, #tpu.memory_space<vmem>>, vector<8x8xf32>,
    %c0_6 = arith.constant 0 : index
    %c8_7 = arith.constant 8 : index
    %7 = vector.load %arg0[%c0_6, %c8_7] : memref<8x424xf32, #tpu.memory_space<vmem>>, vector<8x8xf32>
    %cst_8 = arith.constant dense<0.000000e+00> : vector<8x8xf32>
    %8 = tpu.matmul %5, %7, %cst_8 {dimension_numbers = #tpu.dot_dimension_numbers<[1], [0], [0], [1], [0, 0, 1, 1], [], []>} : vector<8x8xf32>, vector<8x8xf32>, vector<8x8xf32> -> vector<8x8xf32>
    %c0_9 = arith.constant 0 : index
    %c72 = arith.constant 72 : index
    %9 = vector.load %arg0[%c0_9, %c72] : memref<8x424xf32, #tpu.memory_space<vmem>>, vector<8x8xf32>
    %10 = arith.addf %8, %9 : vector<8x8xf32>
    %c0_10 = arith.constant 0 : index
    %c16 = arith.constant 16 : index
    %11 = vector.load %arg4[%c0_10, %c16] : memref<8x128xf32, #tpu.memory_space<vmem>>, vector<8x8xf32>
    tpu.vector_store %arg4[%c0_10, %c16], %10 {strides = array<i32>} : memref<8x128xf32, #tpu.memory_space<vmem>>, vector<8x8xf32>,
    %c0_11 = arith.constant 0 : index
    %c16_12 = arith.constant 16 : index
    %12 = vector.load %arg0[%c0_11, %c16_12] : memref<8x424xf32, #tpu.memory_space<vmem>>, vector<8x8xf32>
    %cst_13 = arith.constant dense<0.000000e+00> : vector<8x8xf32>
    %13 = tpu.matmul %10, %12, %cst_13 {dimension_numbers = #tpu.dot_dimension_numbers<[1], [0], [0], [1], [0, 0, 1, 1], [], []>} : vector<8x8xf32>, vector<8x8xf32>, vector<8x8xf32> -> vector<8x8xf32>
    %c0_14 = arith.constant 0 : index
    %c80 = arith.constant 80 : index
    %14 = vector.load %arg0[%c0_14, %c80] : memref<8x424xf32, #tpu.memory_space<vmem>>, vector<8x8xf32>
    %15 = arith.addf %13, %14 : vector<8x8xf32>
    %c0_15 = arith.constant 0 : index
    %c24 = arith.constant 24 : index
    %16 = vector.load %arg4[%c0_15, %c24] : memref<8x128xf32, #tpu.memory_space<vmem>>, vector<8x8xf32>
    tpu.vector_store %arg4[%c0_15, %c24], %15 {strides = array<i32>} : memref<8x128xf32, #tpu.memory_space<vmem>>, vector<8x8xf32>,
    %c0_16 = arith.constant 0 : index
    %c24_17 = arith.constant 24 : index
    %17 = vector.load %arg0[%c0_16, %c24_17] : memref<8x424xf32, #tpu.memory_space<vmem>>, vector<8x8xf32>
    %cst_18 = arith.constant dense<0.000000e+00> : vector<8x8xf32>
    %18 = tpu.matmul %15, %17, %cst_18 {dimension_numbers = #tpu.dot_dimension_numbers<[1], [0], [0], [1], [0, 0, 1, 1], [], []>} : vector<8x8xf32>, vector<8x8xf32>, vector<8x8xf32> -> vector<8x8xf32>
    %c0_19 = arith.constant 0 : index
    %c88 = arith.constant 88 : index
    %19 = vector.load %arg0[%c0_19, %c88] : memref<8x424xf32, #tpu.memory_space<vmem>>, vector<8x8xf32>
    %20 = arith.addf %18, %19 : vector<8x8xf32>
    %c0_20 = arith.constant 0 : index
    %c32 = arith.constant 32 : index
    %21 = vector.load %arg4[%c0_20, %c32] : memref<8x128xf32, #tpu.memory_space<vmem>>, vector<8x8xf32>
    tpu.vector_store %arg4[%c0_20, %c32], %20 {strides = array<i32>} : memref<8x128xf32, #tpu.memory_space<vmem>>, vector<8x8xf32>,
    %c0_21 = arith.constant 0 : index
    %c32_22 = arith.constant 32 : index
    %22 = vector.load %arg0[%c0_21, %c32_22] : memref<8x424xf32, #tpu.memory_space<vmem>>, vector<8x8xf32>
    %cst_23 = arith.constant dense<0.000000e+00> : vector<8x8xf32>
    %23 = tpu.matmul %20, %22, %cst_23 {dimension_numbers = #tpu.dot_dimension_numbers<[1], [0], [0], [1], [0, 0, 1, 1], [], []>} : vector<8x8xf32>, vector<8x8xf32>, vector<8x8xf32> -> vector<8x8xf32>
    %c0_24 = arith.constant 0 : index
    %c96 = arith.constant 96 : index
    %24 = vector.load %arg0[%c0_24, %c96] : memref<8x424xf32, #tpu.memory_space<vmem>>, vector<8x8xf32>
    %25 = arith.addf %23, %24 : vector<8x8xf32>
    %c0_25 = arith.constant 0 : index
    %c40 = arith.constant 40 : index
    %26 = vector.load %arg4[%c0_25, %c40] : memref<8x128xf32, #tpu.memory_space<vmem>>, vector<8x8xf32>
    tpu.vector_store %arg4[%c0_25, %c40], %25 {strides = array<i32>} : memref<8x128xf32, #tpu.memory_space<vmem>>, vector<8x8xf32>,
    %c0_26 = arith.constant 0 : index
    %c40_27 = arith.constant 40 : index
    %27 = vector.load %arg0[%c0_26, %c40_27] : memref<8x424xf32, #tpu.memory_space<vmem>>, vector<8x8xf32>
    %cst_28 = arith.constant dense<0.000000e+00> : vector<8x8xf32>
    %28 = tpu.matmul %25, %27, %cst_28 {dimension_numbers = #tpu.dot_dimension_numbers<[1], [0], [0], [1], [0, 0, 1, 1], [], []>} : vector<8x8xf32>, vector<8x8xf32>, vector<8x8xf32> -> vector<8x8xf32>
    %c0_29 = arith.constant 0 : index
    %c104 = arith.constant 104 : index
    %29 = vector.load %arg0[%c0_29, %c104] : memref<8x424xf32, #tpu.memory_space<vmem>>, vector<8x8xf32>
    %30 = arith.addf %28, %29 : vector<8x8xf32>
    %c0_30 = arith.constant 0 : index
    %c48 = arith.constant 48 : index
    %31 = vector.load %arg4[%c0_30, %c48] : memref<8x128xf32, #tpu.memory_space<vmem>>, vector<8x8xf32>
    tpu.vector_store %arg4[%c0_30, %c48], %30 {strides = array<i32>} : memref<8x128xf32, #tpu.memory_space<vmem>>, vector<8x8xf32>,
    %c0_31 = arith.constant 0 : index
    %c48_32 = arith.constant 48 : index
    %32 = vector.load %arg0[%c0_31, %c48_32] : memref<8x424xf32, #tpu.memory_space<vmem>>, vector<8x8xf32>
    %cst_33 = arith.constant dense<0.000000e+00> : vector<8x8xf32>
    %33 = tpu.matmul %30, %32, %cst_33 {dimension_numbers = #tpu.dot_dimension_numbers<[1], [0], [0], [1], [0, 0, 1, 1], [], []>} : vector<8x8xf32>, vector<8x8xf32>, vector<8x8xf32> -> vector<8x8xf32>
    %c0_34 = arith.constant 0 : index
    %c112 = arith.constant 112 : index
    %34 = vector.load %arg0[%c0_34, %c112] : memref<8x424xf32, #tpu.memory_space<vmem>>, vector<8x8xf32>
    %35 = arith.addf %33, %34 : vector<8x8xf32>
    %c0_35 = arith.constant 0 : index
    %c56 = arith.constant 56 : index
    %36 = vector.load %arg4[%c0_35, %c56] : memref<8x128xf32, #tpu.memory_space<vmem>>, vector<8x8xf32>
    tpu.vector_store %arg4[%c0_35, %c56], %35 {strides = array<i32>} : memref<8x128xf32, #tpu.memory_space<vmem>>, vector<8x8xf32>,
    %c0_36 = arith.constant 0 : index
    %c0_37 = arith.constant 0 : index
    %37 = vector.load %arg4[%c0_36, %c0_37] : memref<8x128xf32, #tpu.memory_space<vmem>>, vector<8x64xf32>
    %c0_38 = arith.constant 0 : index
    %c0_39 = arith.constant 0 : index
    %38 = vector.load %arg1[%c0_38, %c0_39] : memref<64x32xf32, #tpu.memory_space<vmem>>, vector<64x32xf32>
    %cst_40 = arith.constant dense<0.000000e+00> : vector<8x32xf32>
    %39 = tpu.matmul %37, %38, %cst_40 {dimension_numbers = #tpu.dot_dimension_numbers<[1], [0], [0], [1], [0, 0, 1, 1], [], []>} : vector<8x64xf32>, vector<64x32xf32>, vector<8x32xf32> -> vector<8x32xf32>
    %c0_41 = arith.constant 0 : index
    %c232 = arith.constant 232 : index
    %40 = vector.load %arg0[%c0_41, %c232] : memref<8x424xf32, #tpu.memory_space<vmem>>, vector<8x32xf32>
    %41 = arith.addf %39, %40 : vector<8x32xf32>
    %c0_42 = arith.constant 0 : index
    %c64_43 = arith.constant 64 : index
    %42 = vector.load %arg4[%c0_42, %c64_43] : memref<8x128xf32, #tpu.memory_space<vmem>>, vector<8x32xf32>
    tpu.vector_store %arg4[%c0_42, %c64_43], %41 {strides = array<i32>} : memref<8x128xf32, #tpu.memory_space<vmem>>, vector<8x32xf32>,
    %cst_44 = arith.constant 0.000000e+00 : f32
    %43 = vector.broadcast %cst_44 : f32 to vector<8x32xf32>
    %c0_45 = arith.constant 0 : index
    %c96_46 = arith.constant 96 : index
    %44 = vector.load %arg4[%c0_45, %c96_46] : memref<8x128xf32, #tpu.memory_space<vmem>>, vector<8x32xf32>
    tpu.vector_store %arg4[%c0_45, %c96_46], %43 {strides = array<i32>} : memref<8x128xf32, #tpu.memory_space<vmem>>, vector<8x32xf32>,
    %cst_47 = arith.constant 1.000000e+00 : f32
    %45 = vector.broadcast %cst_47 : f32 to vector<8x1xf32>
    %c0_48 = arith.constant 0 : index
    %c96_49 = arith.constant 96 : index
    %46 = vector.load %arg4[%c0_48, %c96_49] : memref<8x128xf32, #tpu.memory_space<vmem>>, vector<8x1xf32>
    tpu.vector_store %arg4[%c0_48, %c96_49], %45 {strides = array<i32>} : memref<8x128xf32, #tpu.memory_space<vmem>>, vector<8x1xf32>,
    %c0_50 = arith.constant 0 : index
    %c0_51 = arith.constant 0 : index
    %47 = vector.load %arg4[%c0_50, %c0_51] : memref<8x128xf32, #tpu.memory_space<vmem>>, vector<8x128xf32>
    %48 = vector.extract_strided_slice %47 {offsets = [0, 0], sizes = [8, 96], strides = [1, 1]} : vector<8x128xf32> to vector<8x96xf32>
    %c0_52 = arith.constant 0 : index
    %c264 = arith.constant 264 : index
    %49 = vector.load %arg0[%c0_52, %c264] : memref<8x424xf32, #tpu.memory_space<vmem>>, vector<8x160xf32>
    %c0_53 = arith.constant 0 : index
    %c0_54 = arith.constant 0 : index
    %50 = vector.load %arg2[%c0_53, %c0_54] : memref<96x160xf32, #tpu.memory_space<vmem>>, vector<96x160xf32>
    %cst_55 = arith.constant dense<0.000000e+00> : vector<8x160xf32>
    %51 = tpu.matmul %48, %50, %cst_55 {dimension_numbers = #tpu.dot_dimension_numbers<[1], [0], [0], [1], [0, 0, 1, 1], [], []>} : vector<8x96xf32>, vector<96x160xf32>, vector<8x160xf32> -> vector<8x160xf32>
    %52 = arith.addf %51, %49 : vector<8x160xf32>
    %53 = vector.extract_strided_slice %49 {offsets = [0, 0], sizes = [8, 96], strides = [1, 1]} : vector<8x160xf32> to vector<8x96xf32>
    %54 = vector.extract_strided_slice %52 {offsets = [0, 0], sizes = [8, 96], strides = [1, 1]} : vector<8x160xf32> to vector<8x96xf32>
    %55 = arith.addf %54, %53 : vector<8x96xf32>
    %cst_56 = arith.constant 5.000000e-01 : f32
    %56 = vector.broadcast %cst_56 : f32 to vector<8x96xf32>
    %57 = arith.mulf %56, %55 : vector<8x96xf32>
    %58 = arith.mulf %48, %57 : vector<8x96xf32>
    %cst_57 = arith.constant dense<0.000000e+00> : vector<8xf32>
    %59 = vector.multi_reduction <add>, %58, %cst_57 [1] : vector<8x96xf32> to vector<8xf32>
    %60 = vector.shape_cast %59 : vector<8xf32> to vector<8x1xf32>
    %cst_58 = arith.constant 0.000000e+00 : f32
    %61 = vector.broadcast %cst_58 : f32 to vector<8x8xf32>
    %c0_59 = arith.constant 0 : index
    %c32_60 = arith.constant 32 : index
    %62 = vector.load %arg5[%c0_59, %c32_60] : memref<8x40xf32, #tpu.memory_space<vmem>>, vector<8x8xf32>
    tpu.vector_store %arg5[%c0_59, %c32_60], %61 {strides = array<i32>} : memref<8x40xf32, #tpu.memory_space<vmem>>, vector<8x8xf32>,
    %c0_61 = arith.constant 0 : index
    %c32_62 = arith.constant 32 : index
    %63 = vector.load %arg5[%c0_61, %c32_62] : memref<8x40xf32, #tpu.memory_space<vmem>>, vector<8x1xf32>
    tpu.vector_store %arg5[%c0_61, %c32_62], %60 {strides = array<i32>} : memref<8x40xf32, #tpu.memory_space<vmem>>, vector<8x1xf32>,
    %64 = vector.extract_strided_slice %52 {offsets = [0, 92], sizes = [8, 4], strides = [1, 1]} : vector<8x160xf32> to vector<8x4xf32>
    %cst_63 = arith.constant 0.000000e+00 : f32
    %65 = vector.broadcast %cst_63 : f32 to vector<8x4xf32>
    %66 = arith.subf %65, %64 : vector<8x4xf32>
    %c0_64 = arith.constant 0 : index
    %c28 = arith.constant 28 : index
    %67 = vector.load %arg5[%c0_64, %c28] : memref<8x40xf32, #tpu.memory_space<vmem>>, vector<8x4xf32>
    tpu.vector_store %arg5[%c0_64, %c28], %66 {strides = array<i32>} : memref<8x40xf32, #tpu.memory_space<vmem>>, vector<8x4xf32>,
    %68 = vector.extract_strided_slice %52 {offsets = [0, 152], sizes = [8, 8], strides = [1, 1]} : vector<8x160xf32> to vector<8x8xf32>
    %c0_65 = arith.constant 0 : index
    %c200 = arith.constant 200 : index
    %69 = vector.load %arg0[%c0_65, %c200] : memref<8x424xf32, #tpu.memory_space<vmem>>, vector<8x12xf32>
    %cst_66 = arith.constant dense<0.000000e+00> : vector<8x12xf32>
    %70 = tpu.matmul %68, %69, %cst_66 {dimension_numbers = #tpu.dot_dimension_numbers<[1], [0], [0], [1], [0, 0, 1, 1], [], []>} : vector<8x8xf32>, vector<8x12xf32>, vector<8x12xf32> -> vector<8x12xf32>
    %71 = vector.extract_strided_slice %70 {offsets = [0, 8], sizes = [8, 4], strides = [1, 1]} : vector<8x12xf32> to vector<8x4xf32>
    %72 = vector.extract_strided_slice %52 {offsets = [0, 88], sizes = [8, 4], strides = [1, 1]} : vector<8x160xf32> to vector<8x4xf32>
    %73 = arith.subf %71, %72 : vector<8x4xf32>
    %c0_67 = arith.constant 0 : index
    %c24_68 = arith.constant 24 : index
    %74 = vector.load %arg5[%c0_67, %c24_68] : memref<8x40xf32, #tpu.memory_space<vmem>>, vector<8x4xf32>
    tpu.vector_store %arg5[%c0_67, %c24_68], %73 {strides = array<i32>} : memref<8x40xf32, #tpu.memory_space<vmem>>, vector<8x4xf32>,
    %75 = vector.extract_strided_slice %70 {offsets = [0, 0], sizes = [8, 8], strides = [1, 1]} : vector<8x12xf32> to vector<8x8xf32>
    %76 = vector.extract_strided_slice %52 {offsets = [0, 144], sizes = [8, 8], strides = [1, 1]} : vector<8x160xf32> to vector<8x8xf32>
    %77 = arith.addf %75, %76 : vector<8x8xf32>
    %c0_69 = arith.constant 0 : index
    %c188 = arith.constant 188 : index
    %78 = vector.load %arg0[%c0_69, %c188] : memref<8x424xf32, #tpu.memory_space<vmem>>, vector<8x12xf32>
    %cst_70 = arith.constant dense<0.000000e+00> : vector<8x12xf32>
    %79 = tpu.matmul %77, %78, %cst_70 {dimension_numbers = #tpu.dot_dimension_numbers<[1], [0], [0], [1], [0, 0, 1, 1], [], []>} : vector<8x8xf32>, vector<8x12xf32>, vector<8x12xf32> -> vector<8x12xf32>
    %80 = vector.extract_strided_slice %79 {offsets = [0, 8], sizes = [8, 4], strides = [1, 1]} : vector<8x12xf32> to vector<8x4xf32>
    %81 = vector.extract_strided_slice %52 {offsets = [0, 84], sizes = [8, 4], strides = [1, 1]} : vector<8x160xf32> to vector<8x4xf32>
    %82 = arith.subf %80, %81 : vector<8x4xf32>
    %c0_71 = arith.constant 0 : index
    %c20 = arith.constant 20 : index
    %83 = vector.load %arg5[%c0_71, %c20] : memref<8x40xf32, #tpu.memory_space<vmem>>, vector<8x4xf32>
    tpu.vector_store %arg5[%c0_71, %c20], %82 {strides = array<i32>} : memref<8x40xf32, #tpu.memory_space<vmem>>, vector<8x4xf32>,
    %84 = vector.extract_strided_slice %79 {offsets = [0, 0], sizes = [8, 8], strides = [1, 1]} : vector<8x12xf32> to vector<8x8xf32>
    %85 = vector.extract_strided_slice %52 {offsets = [0, 136], sizes = [8, 8], strides = [1, 1]} : vector<8x160xf32> to vector<8x8xf32>
    %86 = arith.addf %84, %85 : vector<8x8xf32>
    %c0_72 = arith.constant 0 : index
    %c176 = arith.constant 176 : index
    %87 = vector.load %arg0[%c0_72, %c176] : memref<8x424xf32, #tpu.memory_space<vmem>>, vector<8x12xf32>
    %cst_73 = arith.constant dense<0.000000e+00> : vector<8x12xf32>
    %88 = tpu.matmul %86, %87, %cst_73 {dimension_numbers = #tpu.dot_dimension_numbers<[1], [0], [0], [1], [0, 0, 1, 1], [], []>} : vector<8x8xf32>, vector<8x12xf32>, vector<8x12xf32> -> vector<8x12xf32>
    %89 = vector.extract_strided_slice %88 {offsets = [0, 8], sizes = [8, 4], strides = [1, 1]} : vector<8x12xf32> to vector<8x4xf32>
    %90 = vector.extract_strided_slice %52 {offsets = [0, 80], sizes = [8, 4], strides = [1, 1]} : vector<8x160xf32> to vector<8x4xf32>
    %91 = arith.subf %89, %90 : vector<8x4xf32>
    %c0_74 = arith.constant 0 : index
    %c16_75 = arith.constant 16 : index
    %92 = vector.load %arg5[%c0_74, %c16_75] : memref<8x40xf32, #tpu.memory_space<vmem>>, vector<8x4xf32>
    tpu.vector_store %arg5[%c0_74, %c16_75], %91 {strides = array<i32>} : memref<8x40xf32, #tpu.memory_space<vmem>>, vector<8x4xf32>,
    %93 = vector.extract_strided_slice %88 {offsets = [0, 0], sizes = [8, 8], strides = [1, 1]} : vector<8x12xf32> to vector<8x8xf32>
    %94 = vector.extract_strided_slice %52 {offsets = [0, 128], sizes = [8, 8], strides = [1, 1]} : vector<8x160xf32> to vector<8x8xf32>
    %95 = arith.addf %93, %94 : vector<8x8xf32>
    %c0_76 = arith.constant 0 : index
    %c164 = arith.constant 164 : index
    %96 = vector.load %arg0[%c0_76, %c164] : memref<8x424xf32, #tpu.memory_space<vmem>>, vector<8x12xf32>
    %cst_77 = arith.constant dense<0.000000e+00> : vector<8x12xf32>
    %97 = tpu.matmul %95, %96, %cst_77 {dimension_numbers = #tpu.dot_dimension_numbers<[1], [0], [0], [1], [0, 0, 1, 1], [], []>} : vector<8x8xf32>, vector<8x12xf32>, vector<8x12xf32> -> vector<8x12xf32>
    %98 = vector.extract_strided_slice %97 {offsets = [0, 8], sizes = [8, 4], strides = [1, 1]} : vector<8x12xf32> to vector<8x4xf32>
    %99 = vector.extract_strided_slice %52 {offsets = [0, 76], sizes = [8, 4], strides = [1, 1]} : vector<8x160xf32> to vector<8x4xf32>
    %100 = arith.subf %98, %99 : vector<8x4xf32>
    %c0_78 = arith.constant 0 : index
    %c12 = arith.constant 12 : index
    %101 = vector.load %arg5[%c0_78, %c12] : memref<8x40xf32, #tpu.memory_space<vmem>>, vector<8x4xf32>
    tpu.vector_store %arg5[%c0_78, %c12], %100 {strides = array<i32>} : memref<8x40xf32, #tpu.memory_space<vmem>>, vector<8x4xf32>,
    %102 = vector.extract_strided_slice %97 {offsets = [0, 0], sizes = [8, 8], strides = [1, 1]} : vector<8x12xf32> to vector<8x8xf32>
    %103 = vector.extract_strided_slice %52 {offsets = [0, 120], sizes = [8, 8], strides = [1, 1]} : vector<8x160xf32> to vector<8x8xf32>
    %104 = arith.addf %102, %103 : vector<8x8xf32>
    %c0_79 = arith.constant 0 : index
    %c152 = arith.constant 152 : index
    %105 = vector.load %arg0[%c0_79, %c152] : memref<8x424xf32, #tpu.memory_space<vmem>>, vector<8x12xf32>
    %cst_80 = arith.constant dense<0.000000e+00> : vector<8x12xf32>
    %106 = tpu.matmul %104, %105, %cst_80 {dimension_numbers = #tpu.dot_dimension_numbers<[1], [0], [0], [1], [0, 0, 1, 1], [], []>} : vector<8x8xf32>, vector<8x12xf32>, vector<8x12xf32> -> vector<8x12xf32>
    %107 = vector.extract_strided_slice %106 {offsets = [0, 8], sizes = [8, 4], strides = [1, 1]} : vector<8x12xf32> to vector<8x4xf32>
    %108 = vector.extract_strided_slice %52 {offsets = [0, 72], sizes = [8, 4], strides = [1, 1]} : vector<8x160xf32> to vector<8x4xf32>
    %109 = arith.subf %107, %108 : vector<8x4xf32>
    %c0_81 = arith.constant 0 : index
    %c8_82 = arith.constant 8 : index
    %110 = vector.load %arg5[%c0_81, %c8_82] : memref<8x40xf32, #tpu.memory_space<vmem>>, vector<8x4xf32>
    tpu.vector_store %arg5[%c0_81, %c8_82], %109 {strides = array<i32>} : memref<8x40xf32, #tpu.memory_space<vmem>>, vector<8x4xf32>,
    %111 = vector.extract_strided_slice %106 {offsets = [0, 0], sizes = [8, 8], strides = [1, 1]} : vector<8x12xf32> to vector<8x8xf32>
    %112 = vector.extract_strided_slice %52 {offsets = [0, 112], sizes = [8, 8], strides = [1, 1]} : vector<8x160xf32> to vector<8x8xf32>
    %113 = arith.addf %111, %112 : vector<8x8xf32>
    %c0_83 = arith.constant 0 : index
    %c140 = arith.constant 140 : index
    %114 = vector.load %arg0[%c0_83, %c140] : memref<8x424xf32, #tpu.memory_space<vmem>>, vector<8x12xf32>
    %cst_84 = arith.constant dense<0.000000e+00> : vector<8x12xf32>
    %115 = tpu.matmul %113, %114, %cst_84 {dimension_numbers = #tpu.dot_dimension_numbers<[1], [0], [0], [1], [0, 0, 1, 1], [], []>} : vector<8x8xf32>, vector<8x12xf32>, vector<8x12xf32> -> vector<8x12xf32>
    %116 = vector.extract_strided_slice %115 {offsets = [0, 8], sizes = [8, 4], strides = [1, 1]} : vector<8x12xf32> to vector<8x4xf32>
    %117 = vector.extract_strided_slice %52 {offsets = [0, 68], sizes = [8, 4], strides = [1, 1]} : vector<8x160xf32> to vector<8x4xf32>
    %118 = arith.subf %116, %117 : vector<8x4xf32>
    %c0_85 = arith.constant 0 : index
    %c4 = arith.constant 4 : index
    %119 = vector.load %arg5[%c0_85, %c4] : memref<8x40xf32, #tpu.memory_space<vmem>>, vector<8x4xf32>
    tpu.vector_store %arg5[%c0_85, %c4], %118 {strides = array<i32>} : memref<8x40xf32, #tpu.memory_space<vmem>>, vector<8x4xf32>,
    %120 = vector.extract_strided_slice %115 {offsets = [0, 0], sizes = [8, 8], strides = [1, 1]} : vector<8x12xf32> to vector<8x8xf32>
    %121 = vector.extract_strided_slice %52 {offsets = [0, 104], sizes = [8, 8], strides = [1, 1]} : vector<8x160xf32> to vector<8x8xf32>
    %122 = arith.addf %120, %121 : vector<8x8xf32>
    %c0_86 = arith.constant 0 : index
    %c128 = arith.constant 128 : index
    %123 = vector.load %arg0[%c0_86, %c128] : memref<8x424xf32, #tpu.memory_space<vmem>>, vector<8x12xf32>
    %cst_87 = arith.constant dense<0.000000e+00> : vector<8x12xf32>
    %124 = tpu.matmul %122, %123, %cst_87 {dimension_numbers = #tpu.dot_dimension_numbers<[1], [0], [0], [1], [0, 0, 1, 1], [], []>} : vector<8x8xf32>, vector<8x12xf32>, vector<8x12xf32> -> vector<8x12xf32>
    %125 = vector.extract_strided_slice %124 {offsets = [0, 8], sizes = [8, 4], strides = [1, 1]} : vector<8x12xf32> to vector<8x4xf32>
    %126 = vector.extract_strided_slice %52 {offsets = [0, 64], sizes = [8, 4], strides = [1, 1]} : vector<8x160xf32> to vector<8x4xf32>
    %127 = arith.subf %125, %126 : vector<8x4xf32>
    %c0_88 = arith.constant 0 : index
    %c0_89 = arith.constant 0 : index
    %128 = vector.load %arg5[%c0_88, %c0_89] : memref<8x40xf32, #tpu.memory_space<vmem>>, vector<8x4xf32>
    tpu.vector_store %arg5[%c0_88, %c0_89], %127 {strides = array<i32>} : memref<8x40xf32, #tpu.memory_space<vmem>>, vector<8x4xf32>,
    %c0_90 = arith.constant 0 : index
    %c0_91 = arith.constant 0 : index
    %129 = vector.load %arg5[%c0_90, %c0_91] : memref<8x40xf32, #tpu.memory_space<vmem>>, vector<8x40xf32>
    %cst_92 = arith.constant dense<0.000000e+00> : vector<40x128xf32>
    %130 = tpu.matmul %129, %47, %cst_92 {dimension_numbers = #tpu.dot_dimension_numbers<[0], [0], [1], [1], [0, 1, 1, 1], [], []>} : vector<8x40xf32>, vector<8x128xf32>, vector<40x128xf32> -> vector<40x128xf32>
    %cst_93 = arith.constant 1.250000e-01 : f32
    %131 = vector.broadcast %cst_93 : f32 to vector<40x128xf32>
    %132 = arith.mulf %130, %131 : vector<40x128xf32>
    %c0_94 = arith.constant 0 : index
    %c0_95 = arith.constant 0 : index
    %133 = vector.load %arg3[%c0_94, %c0_95] : memref<40x128xf32, #tpu.memory_space<vmem>>, vector<40x128xf32>
    tpu.vector_store %arg3[%c0_94, %c0_95], %132 {strides = array<i32>} : memref<40x128xf32, #tpu.memory_space<vmem>>, vector<40x128xf32>,
    return
  }
}

</mosaic_0001>

<llo_original>
// kernel: squeeze.11
$region0: #{squeeze.11}
  %s0 = inlined_call_operand.vmem [shape: f32[32], index: 0, kind: input, shape index: {}]
  %s1 = inlined_call_operand.vmem [shape: f32[8,4], index: 1, kind: output, shape index: {}]
  $region1: #{squeeze.11} parent=0
    #allocation0 [shape = 'u8[4096]{0}', space=vmem, size = 0x1000, scoped, tag = 'scoped mem for input reshape']
    %s3 = sshll.u32 1, 1
    %s4 = ssub.s32 %s3, 1
    %v5 = vld [vmem:[%s0] sm:%s4]
    %6 = vst [vmem:[#allocation0] sm:%s4] %v5
    %v7 = vld [vmem:[#allocation0] sm:$0x1]
    %vm8 = vcmask 31744
    %9 = vst.msk [vmem:[%s1] sm:$0x1] %vm8, %v7
    %v10 = vld [vmem:[#allocation0] sm:$0x1]
    %11 = vrot.lane.b32.xlu0 %v10, 124
    %v12 = vpop.permute.xlu0 %11
    %vm13 = vcmask 31744
    %s14 = scalar_lea.vmem %s1, 1
    %15 = vst.msk [vmem:[%s14] sm:$0x1] %vm13, %v12
    %v16 = vld [vmem:[#allocation0] sm:$0x1]
    %17 = vrot.lane.b32.xlu0 %v16, 120
    %v18 = vpop.permute.xlu0 %17
    %vm19 = vcmask 31744
    %s20 = scalar_lea.vmem %s1, 2
    %21 = vst.msk [vmem:[%s20] sm:$0x1] %vm19, %v18
    %v22 = vld [vmem:[#allocation0] sm:$0x1]
    %23 = vrot.lane.b32.xlu0 %v22, 116
    %v24 = vpop.permute.xlu0 %23
    %vm25 = vcmask 31744
    %s26 = scalar_lea.vmem %s1, 3
    %27 = vst.msk [vmem:[%s26] sm:$0x1] %vm25, %v24
    %v28 = vld [vmem:[#allocation0] sm:$0x1]
    %29 = vrot.lane.b32.xlu0 %v28, 112
    %v30 = vpop.permute.xlu0 %29
    %vm31 = vcmask 31744
    %s32 = scalar_lea.vmem %s1, 4
    %33 = vst.msk [vmem:[%s32] sm:$0x1] %vm31, %v30
    %v34 = vld [vmem:[#allocation0] sm:$0x1]
    %35 = vrot.lane.b32.xlu0 %v34, 108
    %v36 = vpop.permute.xlu0 %35
    %vm37 = vcmask 31744
    %s38 = scalar_lea.vmem %s1, 5
    %39 = vst.msk [vmem:[%s38] sm:$0x1] %vm37, %v36
    %v40 = vld [vmem:[#allocation0] sm:$0x1]
    %41 = vrot.lane.b32.xlu0 %v40, 104
    %v42 = vpop.permute.xlu0 %41
    %vm43 = vcmask 31744
    %s44 = scalar_lea.vmem %s1, 6
    %45 = vst.msk [vmem:[%s44] sm:$0x1] %vm43, %v42
    %v46 = vld [vmem:[#allocation0] sm:$0x1]
    %47 = vrot.lane.b32.xlu0 %v46, 100
    %v48 = vpop.permute.xlu0 %47
    %vm49 = vcmask 31744
    %s50 = scalar_lea.vmem %s1, 7
    %51 = vst.msk [vmem:[%s50] sm:$0x1] %vm49, %v48

// kernel: monte_carlo_svg.1
$region0: #{monte_carlo_svg.1}
  #allocation0 [shape = 'u32[]', space=smem, size = 0x4, offset = 0x4, fixed_abs, tag = 'smem constant byte address 0x4 - core index']
  #allocation1 [shape = 'u32[144,128]{1,0:T(1,128)}', space=vmem, size = 0x12000, scoped, tag = 'internal scratch']
  #allocation2 [shape = 'f32[8,128]{1,0:T(8,128)}', space=vmem, size = 0x1000, scoped, tag = 'scratch operand']
  #allocation3 [shape = 'f32[8,40]{1,0:T(8,128)}', space=vmem, size = 0x1000, scoped, tag = 'scratch operand']
  %s0 = inlined_call_operand.vmem [shape: f32[8,424], index: 0, kind: input, shape index: {}]
  %s1 = inlined_call_operand.vmem [shape: f32[64,32], index: 1, kind: input, shape index: {}]
  %s2 = inlined_call_operand.vmem [shape: f32[96,160], index: 2, kind: input, shape index: {}]
  %s3 = inlined_call_operand.vmem [shape: f32[40,128], index: 3, kind: output, shape index: {}]
  %s4 = sld [smem:[#allocation0]]
  $region22: #{monte_carlo_svg.1} parent=0
    _
  %s6 = ssub.s32 1, %s4
  %s7 = scalar_select 0, %s6, %s4
  // Predicated region
  $region2: #{monte_carlo_svg.1} parent=0 // pred_check
    _
  $region3: #{monte_carlo_svg.1} parent=0 // pred_check_branch
    %9 = sbr.rel (0) target = $region5
  $region4: #{monte_carlo_svg.1} parent=0 // pred_region
    _
  $region5: #{monte_carlo_svg.1} parent=0 // pred_fallthru
    _
  // Predicated region
  $region6: #{monte_carlo_svg.1} parent=0 // pred_check
    _
  $region7: #{monte_carlo_svg.1} parent=0 // pred_check_branch
    %11 = sbr.rel (0) target = $region9
  $region8: #{monte_carlo_svg.1} parent=0 // pred_region
    _
  $region9: #{monte_carlo_svg.1} parent=0 // pred_fallthru
    _
  // Predicated region
  $region10: #{monte_carlo_svg.1} parent=0 // pred_check
    _
  $region11: #{monte_carlo_svg.1} parent=0 // pred_check_branch
    %13 = sbr.rel (0) target = $region13
  $region12: #{monte_carlo_svg.1} parent=0 // pred_region
    _
  $region13: #{monte_carlo_svg.1} parent=0 // pred_fallthru
    _
  %v14 = vld [vmem:[%s0 + $0x8] sm:$0xff]
  %16 = vrot.lane.b32.xlu0 %v14, 32
  %v17 = vpop.permute.xlu0 %16
  %vm19 = vcmask 64512
  %20 = vst.msk [vmem:[#allocation2] sm:$0xff] %vm19, %v17
  %v21 = vld [vmem:[%s0] sm:$0xff]
  %23 = vrot.lane.b32.xlu0 %v21, 64
  %v24 = vpop.permute.xlu0 %23
  %v26 = vsel %vm19, %v17, 0
  %28 = vmatprep.subr.mxu0 0.0
  %29 = vmatpush1.msra.mxu0 0.0
  %30 = vmatprep.subr.mxu0 0.0
  %31 = vmatpush1.msra.mxu0 0.0
  %32 = vmatprep.subr.mxu0 0.0
  %33 = vmatpush1.msra.mxu0 0.0
  %34 = vmatprep.subr.mxu0 0.0
  %35 = vmatpush1.msra.mxu0 0.0
  %36 = vmatprep.subr.mxu0 0.0
  %37 = vmatpush1.msra.mxu0 0.0
  %38 = vmatprep.subr.mxu0 0.0
  %39 = vmatpush1.msra.mxu0 0.0
  %40 = vmatprep.subr.mxu0 0.0
  %41 = vmatpush1.msra.mxu0 0.0
  %42 = vmatprep.subr.mxu0 0.0
  %43 = vmatpush1.msra.mxu0 0.0
  %44 = vmatprep.subr.mxu0 0.0
  %45 = vmatpush1.msra.mxu0 0.0
  %46 = vmatprep.subr.mxu0 0.0
  %47 = vmatpush1.msra.mxu0 0.0
  %48 = vmatprep.subr.mxu0 0.0
  %49 = vmatpush1.msra.mxu0 0.0
  %50 = vmatprep.subr.mxu0 0.0
  %51 = vmatpush1.msra.mxu0 0.0
  %52 = vmatprep.subr.mxu0 0.0
  %53 = vmatpush1.msra.mxu0 0.0
  %54 = vmatprep.subr.mxu0 0.0
  %55 = vmatpush1.msra.mxu0 0.0
  %56 = vmatprep.subr.mxu0 0.0
  %57 = vmatpush1.msra.mxu0 0.0
  %58 = vmatprep.subr.mxu0 0.0
  %59 = vmatpush1.msra.mxu0 %v21
  %60 = vmatprep.subr.mxu0 0.0
  %61 = vmatpush2.msra.mxu0 0.0
  %62 = vmatprep.subr.mxu0 0.0
  %63 = vmatpush2.msra.mxu0 0.0
  %64 = vmatprep.subr.mxu0 0.0
  %65 = vmatpush2.msra.mxu0 0.0
  %66 = vmatprep.subr.mxu0 0.0
  %67 = vmatpush2.msra.mxu0 0.0
  %68 = vmatprep.subr.mxu0 0.0
  %69 = vmatpush2.msra.mxu0 0.0
  %70 = vmatprep.subr.mxu0 0.0
  %71 = vmatpush2.msra.mxu0 0.0
  %72 = vmatprep.subr.mxu0 0.0
  %73 = vmatpush2.msra.mxu0 0.0
  %74 = vmatprep.subr.mxu0 0.0
  %75 = vmatpush2.msra.mxu0 0.0
  %76 = vmatprep.subr.mxu0 0.0
  %77 = vmatpush2.msra.mxu0 0.0
  %78 = vmatprep.subr.mxu0 0.0
  %79 = vmatpush2.msra.mxu0 0.0
  %80 = vmatprep.subr.mxu0 0.0
  %81 = vmatpush2.msra.mxu0 0.0
  %82 = vmatprep.subr.mxu0 0.0
  %83 = vmatpush2.msra.mxu0 0.0
  %84 = vmatprep.subr.mxu0 0.0
  %85 = vmatpush2.msra.mxu0 0.0
  %86 = vmatprep.subr.mxu0 0.0
  %87 = vmatpush2.msra.mxu0 0.0
  %88 = vmatprep.subr.mxu0 0.0
  %89 = vmatpush2.msra.mxu0 0.0
  %90 = vmatprep.subr.mxu0 0.0
  %91 = vmatpush2.msra.mxu0 0.0
  %92 = vmatprep.mubr.f32.mxu0 0.0
  %93 = vmatmul.mubr.f32.gmra.mxu0 %v26
  %v94 = vpop.f32.mrf.mxu0
  %v95 = vadd.f32 %v24, %v94
  %v96 = vpop.f32.mrf.mxu0
  %97 = vdwg.mxu0
  %99 = vrot.lane.b32.xlu0 %v95, 8
  %v100 = vpop.permute.xlu0 %99
  %vm102 = vcmask 130112
  %103 = vst.msk [vmem:[#allocation2] sm:$0xff] %vm102, %v100
  %v104 = vld [vmem:[%s0] sm:$0xff]
  %106 = vrot.lane.b32.xlu0 %v104, 120
  %v107 = vpop.permute.xlu0 %106
  %109 = vrot.lane.b32.xlu0 %v104, 56
  %v110 = vpop.permute.xlu0 %109
  %v112 = vsel %vm19, %v95, 0
  %114 = vmatprep.subr.mxu0 0.0
  %115 = vmatpush1.msra.mxu0 0.0
  %116 = vmatprep.subr.mxu0 0.0
  %117 = vmatpush1.msra.mxu0 0.0
  %118 = vmatprep.subr.mxu0 0.0
  %119 = vmatpush1.msra.mxu0 0.0
  %120 = vmatprep.subr.mxu0 0.0
  %121 = vmatpush1.msra.mxu0 0.0
  %122 = vmatprep.subr.mxu0 0.0
  %123 = vmatpush1.msra.mxu0 0.0
  %124 = vmatprep.subr.mxu0 0.0
  %125 = vmatpush1.msra.mxu0 0.0
  %126 = vmatprep.subr.mxu0 0.0
  %127 = vmatpush1.msra.mxu0 0.0
  %128 = vmatprep.subr.mxu0 0.0
  %129 = vmatpush1.msra.mxu0 0.0
  %130 = vmatprep.subr.mxu0 0.0
  %131 = vmatpush1.msra.mxu0 0.0
  %132 = vmatprep.subr.mxu0 0.0
  %133 = vmatpush1.msra.mxu0 0.0
  %134 = vmatprep.subr.mxu0 0.0
  %135 = vmatpush1.msra.mxu0 0.0
  %136 = vmatprep.subr.mxu0 0.0
  %137 = vmatpush1.msra.mxu0 0.0
  %138 = vmatprep.subr.mxu0 0.0
  %139 = vmatpush1.msra.mxu0 0.0
  %140 = vmatprep.subr.mxu0 0.0
  %141 = vmatpush1.msra.mxu0 0.0
  %142 = vmatprep.subr.mxu0 0.0
  %143 = vmatpush1.msra.mxu0 0.0
  %144 = vmatprep.subr.mxu0 0.0
  %145 = vmatpush1.msra.mxu0 %v107
  %146 = vmatprep.subr.mxu0 0.0
  %147 = vmatpush2.msra.mxu0 0.0
  %148 = vmatprep.subr.mxu0 0.0
  %149 = vmatpush2.msra.mxu0 0.0
  %150 = vmatprep.subr.mxu0 0.0
  %151 = vmatpush2.msra.mxu0 0.0
  %152 = vmatprep.subr.mxu0 0.0
  %153 = vmatpush2.msra.mxu0 0.0
  %154 = vmatprep.subr.mxu0 0.0
  %155 = vmatpush2.msra.mxu0 0.0
  %156 = vmatprep.subr.mxu0 0.0
  %157 = vmatpush2.msra.mxu0 0.0
  %158 = vmatprep.subr.mxu0 0.0
  %159 = vmatpush2.msra.mxu0 0.0
  %160 = vmatprep.subr.mxu0 0.0
  %161 = vmatpush2.msra.mxu0 0.0
  %162 = vmatprep.subr.mxu0 0.0
  %163 = vmatpush2.msra.mxu0 0.0
  %164 = vmatprep.subr.mxu0 0.0
  %165 = vmatpush2.msra.mxu0 0.0
  %166 = vmatprep.subr.mxu0 0.0
  %167 = vmatpush2.msra.mxu0 0.0
  %168 = vmatprep.subr.mxu0 0.0
  %169 = vmatpush2.msra.mxu0 0.0
  %170 = vmatprep.subr.mxu0 0.0
  %171 = vmatpush2.msra.mxu0 0.0
  %172 = vmatprep.subr.mxu0 0.0
  %173 = vmatpush2.msra.mxu0 0.0
  %174 = vmatprep.subr.mxu0 0.0
  %175 = vmatpush2.msra.mxu0 0.0
  %176 = vmatprep.subr.mxu0 0.0
  %177 = vmatpush2.msra.mxu0 0.0
  %178 = vmatprep.mubr.f32.mxu0 0.0
  %179 = vmatmul.mubr.f32.gmra.mxu0 %v112
  %v180 = vpop.f32.mrf.mxu0
  %v181 = vadd.f32 %v110, %v180
  %v182 = vpop.f32.mrf.mxu0
  %183 = vdwg.mxu0
  %185 = vrot.lane.b32.xlu0 %v181, 16
  %v186 = vpop.permute.xlu0 %185
  %vm188 = vcmask 195712
  %189 = vst.msk [vmem:[#allocation2] sm:$0xff] %vm188, %v186
  %v190 = vld [vmem:[%s0] sm:$0xff]
  %192 = vrot.lane.b32.xlu0 %v190, 112
  %v193 = vpop.permute.xlu0 %192
  %195 = vrot.lane.b32.xlu0 %v190, 48
  %v196 = vpop.permute.xlu0 %195
  %v198 = vsel %vm19, %v181, 0
  %200 = vmatprep.subr.mxu0 0.0
  %201 = vmatpush1.msra.mxu0 0.0
  %202 = vmatprep.subr.mxu0 0.0
  %203 = vmatpush1.msra.mxu0 0.0
  %204 = vmatprep.subr.mxu0 0.0
  %205 = vmatpush1.msra.mxu0 0.0
  %206 = vmatprep.subr.mxu0 0.0
  %207 = vmatpush1.msra.mxu0 0.0
  %208 = vmatprep.subr.mxu0 0.0
  %209 = vmatpush1.msra.mxu0 0.0
  %210 = vmatprep.subr.mxu0 0.0
  %211 = vmatpush1.msra.mxu0 0.0
  %212 = vmatprep.subr.mxu0 0.0
  %213 = vmatpush1.msra.mxu0 0.0
  %214 = vmatprep.subr.mxu0 0.0
  %215 = vmatpush1.msra.mxu0 0.0
  %216 = vmatprep.subr.mxu0 0.0
  %217 = vmatpush1.msra.mxu0 0.0
  %218 = vmatprep.subr.mxu0 0.0
  %219 = vmatpush1.msra.mxu0 0.0
  %220 = vmatprep.subr.mxu0 0.0
  %221 = vmatpush1.msra.mxu0 0.0
  %222 = vmatprep.subr.mxu0 0.0
  %223 = vmatpush1.msra.mxu0 0.0
  %224 = vmatprep.subr.mxu0 0.0
  %225 = vmatpush1.msra.mxu0 0.0
  %226 = vmatprep.subr.mxu0 0.0
  %227 = vmatpush1.msra.mxu0 0.0
  %228 = vmatprep.subr.mxu0 0.0
  %229 = vmatpush1.msra.mxu0 0.0
  %230 = vmatprep.subr.mxu0 0.0
  %231 = vmatpush1.msra.mxu0 %v193
  %232 = vmatprep.subr.mxu0 0.0
  %233 = vmatpush2.msra.mxu0 0.0
  %234 = vmatprep.subr.mxu0 0.0
  %235 = vmatpush2.msra.mxu0 0.0
  %236 = vmatprep.subr.mxu0 0.0
  %237 = vmatpush2.msra.mxu0 0.0
  %238 = vmatprep.subr.mxu0 0.0
  %239 = vmatpush2.msra.mxu0 0.0
  %240 = vmatprep.subr.mxu0 0.0
  %241 = vmatpush2.msra.mxu0 0.0
  %242 = vmatprep.subr.mxu0 0.0
  %243 = vmatpush2.msra.mxu0 0.0
  %244 = vmatprep.subr.mxu0 0.0
  %245 = vmatpush2.msra.mxu0 0.0
  %246 = vmatprep.subr.mxu0 0.0
  %247 = vmatpush2.msra.mxu0 0.0
  %248 = vmatprep.subr.mxu0 0.0
  %249 = vmatpush2.msra.mxu0 0.0
  %250 = vmatprep.subr.mxu0 0.0
  %251 = vmatpush2.msra.mxu0 0.0
  %252 = vmatprep.subr.mxu0 0.0
  %253 = vmatpush2.msra.mxu0 0.0
  %254 = vmatprep.subr.mxu0 0.0
  %255 = vmatpush2.msra.mxu0 0.0
  %256 = vmatprep.subr.mxu0 0.0
  %257 = vmatpush2.msra.mxu0 0.0
  %258 = vmatprep.subr.mxu0 0.0
  %259 = vmatpush2.msra.mxu0 0.0
  %260 = vmatprep.subr.mxu0 0.0
  %261 = vmatpush2.msra.mxu0 0.0
  %262 = vmatprep.subr.mxu0 0.0
  %263 = vmatpush2.msra.mxu0 0.0
  %264 = vmatprep.mubr.f32.mxu0 0.0
  %265 = vmatmul.mubr.f32.gmra.mxu0 %v198
  %v266 = vpop.f32.mrf.mxu0
  %v267 = vadd.f32 %v196, %v266
  %v268 = vpop.f32.mrf.mxu0
  %269 = vdwg.mxu0
  %271 = vrot.lane.b32.xlu0 %v267, 24
  %v272 = vpop.permute.xlu0 %271
  %vm274 = vcmask 261312
  %275 = vst.msk [vmem:[#allocation2] sm:$0xff] %vm274, %v272
  %v276 = vld [vmem:[%s0] sm:$0xff]
  %278 = vrot.lane.b32.xlu0 %v276, 104
  %v279 = vpop.permute.xlu0 %278
  %281 = vrot.lane.b32.xlu0 %v276, 40
  %v282 = vpop.permute.xlu0 %281
  %v284 = vsel %vm19, %v267, 0
  %286 = vmatprep.subr.mxu0 0.0
  %287 = vmatpush1.msra.mxu0 0.0
  %288 = vmatprep.subr.mxu0 0.0
  %289 = vmatpush1.msra.mxu0 0.0
  %290 = vmatprep.subr.mxu0 0.0
  %291 = vmatpush1.msra.mxu0 0.0
  %292 = vmatprep.subr.mxu0 0.0
  %293 = vmatpush1.msra.mxu0 0.0
  %294 = vmatprep.subr.mxu0 0.0
  %295 = vmatpush1.msra.mxu0 0.0
  %296 = vmatprep.subr.mxu0 0.0
  %297 = vmatpush1.msra.mxu0 0.0
  %298 = vmatprep.subr.mxu0 0.0
  %299 = vmatpush1.msra.mxu0 0.0
  %300 = vmatprep.subr.mxu0 0.0
  %301 = vmatpush1.msra.mxu0 0.0
  %302 = vmatprep.subr.mxu0 0.0
  %303 = vmatpush1.msra.mxu0 0.0
  %304 = vmatprep.subr.mxu0 0.0
  %305 = vmatpush1.msra.mxu0 0.0
  %306 = vmatprep.subr.mxu0 0.0
  %307 = vmatpush1.msra.mxu0 0.0
  %308 = vmatprep.subr.mxu0 0.0
  %309 = vmatpush1.msra.mxu0 0.0
  %310 = vmatprep.subr.mxu0 0.0
  %311 = vmatpush1.msra.mxu0 0.0
  %312 = vmatprep.subr.mxu0 0.0
  %313 = vmatpush1.msra.mxu0 0.0
  %314 = vmatprep.subr.mxu0 0.0
  %315 = vmatpush1.msra.mxu0 0.0
  %316 = vmatprep.subr.mxu0 0.0
  %317 = vmatpush1.msra.mxu0 %v279
  %318 = vmatprep.subr.mxu0 0.0
  %319 = vmatpush2.msra.mxu0 0.0
  %320 = vmatprep.subr.mxu0 0.0
  %321 = vmatpush2.msra.mxu0 0.0
  %322 = vmatprep.subr.mxu0 0.0
  %323 = vmatpush2.msra.mxu0 0.0
  %324 = vmatprep.subr.mxu0 0.0
  %325 = vmatpush2.msra.mxu0 0.0
  %326 = vmatprep.subr.mxu0 0.0
  %327 = vmatpush2.msra.mxu0 0.0
  %328 = vmatprep.subr.mxu0 0.0
  %329 = vmatpush2.msra.mxu0 0.0
  %330 = vmatprep.subr.mxu0 0.0
  %331 = vmatpush2.msra.mxu0 0.0
  %332 = vmatprep.subr.mxu0 0.0
  %333 = vmatpush2.msra.mxu0 0.0
  %334 = vmatprep.subr.mxu0 0.0
  %335 = vmatpush2.msra.mxu0 0.0
  %336 = vmatprep.subr.mxu0 0.0
  %337 = vmatpush2.msra.mxu0 0.0
  %338 = vmatprep.subr.mxu0 0.0
  %339 = vmatpush2.msra.mxu0 0.0
  %340 = vmatprep.subr.mxu0 0.0
  %341 = vmatpush2.msra.mxu0 0.0
  %342 = vmatprep.subr.mxu0 0.0
  %343 = vmatpush2.msra.mxu0 0.0
  %344 = vmatprep.subr.mxu0 0.0
  %345 = vmatpush2.msra.mxu0 0.0
  %346 = vmatprep.subr.mxu0 0.0
  %347 = vmatpush2.msra.mxu0 0.0
  %348 = vmatprep.subr.mxu0 0.0
  %349 = vmatpush2.msra.mxu0 0.0
  %350 = vmatprep.mubr.f32.mxu0 0.0
  %351 = vmatmul.mubr.f32.gmra.mxu0 %v284
  %v352 = vpop.f32.mrf.mxu0
  %v353 = vadd.f32 %v282, %v352
  %v354 = vpop.f32.mrf.mxu0
  %355 = vdwg.mxu0
  %357 = vrot.lane.b32.xlu0 %v353, 32
  %v358 = vpop.permute.xlu0 %357
  %vm360 = vcmask 326912
  %361 = vst.msk [vmem:[#allocation2] sm:$0xff] %vm360, %v358
  %v362 = vld [vmem:[%s0] sm:$0xff]
  %364 = vrot.lane.b32.xlu0 %v362, 96
  %v365 = vpop.permute.xlu0 %364
  %367 = vrot.lane.b32.xlu0 %v362, 32
  %v368 = vpop.permute.xlu0 %367
  %v370 = vsel %vm19, %v353, 0
  %372 = vmatprep.subr.mxu0 0.0
  %373 = vmatpush1.msra.mxu0 0.0
  %374 = vmatprep.subr.mxu0 0.0
  %375 = vmatpush1.msra.mxu0 0.0
  %376 = vmatprep.subr.mxu0 0.0
  %377 = vmatpush1.msra.mxu0 0.0
  %378 = vmatprep.subr.mxu0 0.0
  %379 = vmatpush1.msra.mxu0 0.0
  %380 = vmatprep.subr.mxu0 0.0
  %381 = vmatpush1.msra.mxu0 0.0
  %382 = vmatprep.subr.mxu0 0.0
  %383 = vmatpush1.msra.mxu0 0.0
  %384 = vmatprep.subr.mxu0 0.0
  %385 = vmatpush1.msra.mxu0 0.0
  %386 = vmatprep.subr.mxu0 0.0
  %387 = vmatpush1.msra.mxu0 0.0
  %388 = vmatprep.subr.mxu0 0.0
  %389 = vmatpush1.msra.mxu0 0.0
  %390 = vmatprep.subr.mxu0 0.0
  %391 = vmatpush1.msra.mxu0 0.0
  %392 = vmatprep.subr.mxu0 0.0
  %393 = vmatpush1.msra.mxu0 0.0
  %394 = vmatprep.subr.mxu0 0.0
  %395 = vmatpush1.msra.mxu0 0.0
  %396 = vmatprep.subr.mxu0 0.0
  %397 = vmatpush1.msra.mxu0 0.0
  %398 = vmatprep.subr.mxu0 0.0
  %399 = vmatpush1.msra.mxu0 0.0
  %400 = vmatprep.subr.mxu0 0.0
  %401 = vmatpush1.msra.mxu0 0.0
  %402 = vmatprep.subr.mxu0 0.0
  %403 = vmatpush1.msra.mxu0 %v365
  %404 = vmatprep.subr.mxu0 0.0
  %405 = vmatpush2.msra.mxu0 0.0
  %406 = vmatprep.subr.mxu0 0.0
  %407 = vmatpush2.msra.mxu0 0.0
  %408 = vmatprep.subr.mxu0 0.0
  %409 = vmatpush2.msra.mxu0 0.0
  %410 = vmatprep.subr.mxu0 0.0
  %411 = vmatpush2.msra.mxu0 0.0
  %412 = vmatprep.subr.mxu0 0.0
  %413 = vmatpush2.msra.mxu0 0.0
  %414 = vmatprep.subr.mxu0 0.0
  %415 = vmatpush2.msra.mxu0 0.0
  %416 = vmatprep.subr.mxu0 0.0
  %417 = vmatpush2.msra.mxu0 0.0
  %418 = vmatprep.subr.mxu0 0.0
  %419 = vmatpush2.msra.mxu0 0.0
  %420 = vmatprep.subr.mxu0 0.0
  %421 = vmatpush2.msra.mxu0 0.0
  %422 = vmatprep.subr.mxu0 0.0
  %423 = vmatpush2.msra.mxu0 0.0
  %424 = vmatprep.subr.mxu0 0.0
  %425 = vmatpush2.msra.mxu0 0.0
  %426 = vmatprep.subr.mxu0 0.0
  %427 = vmatpush2.msra.mxu0 0.0
  %428 = vmatprep.subr.mxu0 0.0
  %429 = vmatpush2.msra.mxu0 0.0
  %430 = vmatprep.subr.mxu0 0.0
  %431 = vmatpush2.msra.mxu0 0.0
  %432 = vmatprep.subr.mxu0 0.0
  %433 = vmatpush2.msra.mxu0 0.0
  %434 = vmatprep.subr.mxu0 0.0
  %435 = vmatpush2.msra.mxu0 0.0
  %436 = vmatprep.mubr.f32.mxu0 0.0
  %437 = vmatmul.mubr.f32.gmra.mxu0 %v370
  %v438 = vpop.f32.mrf.mxu0
  %v439 = vadd.f32 %v368, %v438
  %v440 = vpop.f32.mrf.mxu0
  %441 = vdwg.mxu0
  %443 = vrot.lane.b32.xlu0 %v439, 40
  %v444 = vpop.permute.xlu0 %443
  %vm446 = vcmask 392512
  %447 = vst.msk [vmem:[#allocation2] sm:$0xff] %vm446, %v444
  %v448 = vld [vmem:[%s0] sm:$0xff]
  %450 = vrot.lane.b32.xlu0 %v448, 88
  %v451 = vpop.permute.xlu0 %450
  %453 = vrot.lane.b32.xlu0 %v448, 24
  %v454 = vpop.permute.xlu0 %453
  %v456 = vsel %vm19, %v439, 0
  %458 = vmatprep.subr.mxu0 0.0
  %459 = vmatpush1.msra.mxu0 0.0
  %460 = vmatprep.subr.mxu0 0.0
  %461 = vmatpush1.msra.mxu0 0.0
  %462 = vmatprep.subr.mxu0 0.0
  %463 = vmatpush1.msra.mxu0 0.0
  %464 = vmatprep.subr.mxu0 0.0
  %465 = vmatpush1.msra.mxu0 0.0
  %466 = vmatprep.subr.mxu0 0.0
  %467 = vmatpush1.msra.mxu0 0.0
  %468 = vmatprep.subr.mxu0 0.0
  %469 = vmatpush1.msra.mxu0 0.0
  %470 = vmatprep.subr.mxu0 0.0
  %471 = vmatpush1.msra.mxu0 0.0
  %472 = vmatprep.subr.mxu0 0.0
  %473 = vmatpush1.msra.mxu0 0.0
  %474 = vmatprep.subr.mxu0 0.0
  %475 = vmatpush1.msra.mxu0 0.0
  %476 = vmatprep.subr.mxu0 0.0
  %477 = vmatpush1.msra.mxu0 0.0
  %478 = vmatprep.subr.mxu0 0.0
  %479 = vmatpush1.msra.mxu0 0.0
  %480 = vmatprep.subr.mxu0 0.0
  %481 = vmatpush1.msra.mxu0 0.0
  %482 = vmatprep.subr.mxu0 0.0
  %483 = vmatpush1.msra.mxu0 0.0
  %484 = vmatprep.subr.mxu0 0.0
  %485 = vmatpush1.msra.mxu0 0.0
  %486 = vmatprep.subr.mxu0 0.0
  %487 = vmatpush1.msra.mxu0 0.0
  %488 = vmatprep.subr.mxu0 0.0
  %489 = vmatpush1.msra.mxu0 %v451
  %490 = vmatprep.subr.mxu0 0.0
  %491 = vmatpush2.msra.mxu0 0.0
  %492 = vmatprep.subr.mxu0 0.0
  %493 = vmatpush2.msra.mxu0 0.0
  %494 = vmatprep.subr.mxu0 0.0
  %495 = vmatpush2.msra.mxu0 0.0
  %496 = vmatprep.subr.mxu0 0.0
  %497 = vmatpush2.msra.mxu0 0.0
  %498 = vmatprep.subr.mxu0 0.0
  %499 = vmatpush2.msra.mxu0 0.0
  %500 = vmatprep.subr.mxu0 0.0
  %501 = vmatpush2.msra.mxu0 0.0
  %502 = vmatprep.subr.mxu0 0.0
  %503 = vmatpush2.msra.mxu0 0.0
  %504 = vmatprep.subr.mxu0 0.0
  %505 = vmatpush2.msra.mxu0 0.0
  %506 = vmatprep.subr.mxu0 0.0
  %507 = vmatpush2.msra.mxu0 0.0
  %508 = vmatprep.subr.mxu0 0.0
  %509 = vmatpush2.msra.mxu0 0.0
  %510 = vmatprep.subr.mxu0 0.0
  %511 = vmatpush2.msra.mxu0 0.0
  %512 = vmatprep.subr.mxu0 0.0
  %513 = vmatpush2.msra.mxu0 0.0
  %514 = vmatprep.subr.mxu0 0.0
  %515 = vmatpush2.msra.mxu0 0.0
  %516 = vmatprep.subr.mxu0 0.0
  %517 = vmatpush2.msra.mxu0 0.0
  %518 = vmatprep.subr.mxu0 0.0
  %519 = vmatpush2.msra.mxu0 0.0
  %520 = vmatprep.subr.mxu0 0.0
  %521 = vmatpush2.msra.mxu0 0.0
  %522 = vmatprep.mubr.f32.mxu0 0.0
  %523 = vmatmul.mubr.f32.gmra.mxu0 %v456
  %v524 = vpop.f32.mrf.mxu0
  %v525 = vadd.f32 %v454, %v524
  %v526 = vpop.f32.mrf.mxu0
  %527 = vdwg.mxu0
  %529 = vrot.lane.b32.xlu0 %v525, 48
  %v530 = vpop.permute.xlu0 %529
  %vm532 = vcmask 458112
  %533 = vst.msk [vmem:[#allocation2] sm:$0xff] %vm532, %v530
  %v534 = vld [vmem:[%s0] sm:$0xff]
  %536 = vrot.lane.b32.xlu0 %v534, 80
  %v537 = vpop.permute.xlu0 %536
  %539 = vrot.lane.b32.xlu0 %v534, 16
  %v540 = vpop.permute.xlu0 %539
  %v542 = vsel %vm19, %v525, 0
  %544 = vmatprep.subr.mxu0 0.0
  %545 = vmatpush1.msra.mxu0 0.0
  %546 = vmatprep.subr.mxu0 0.0
  %547 = vmatpush1.msra.mxu0 0.0
  %548 = vmatprep.subr.mxu0 0.0
  %549 = vmatpush1.msra.mxu0 0.0
  %550 = vmatprep.subr.mxu0 0.0
  %551 = vmatpush1.msra.mxu0 0.0
  %552 = vmatprep.subr.mxu0 0.0
  %553 = vmatpush1.msra.mxu0 0.0
  %554 = vmatprep.subr.mxu0 0.0
  %555 = vmatpush1.msra.mxu0 0.0
  %556 = vmatprep.subr.mxu0 0.0
  %557 = vmatpush1.msra.mxu0 0.0
  %558 = vmatprep.subr.mxu0 0.0
  %559 = vmatpush1.msra.mxu0 0.0
  %560 = vmatprep.subr.mxu0 0.0
  %561 = vmatpush1.msra.mxu0 0.0
  %562 = vmatprep.subr.mxu0 0.0
  %563 = vmatpush1.msra.mxu0 0.0
  %564 = vmatprep.subr.mxu0 0.0
  %565 = vmatpush1.msra.mxu0 0.0
  %566 = vmatprep.subr.mxu0 0.0
  %567 = vmatpush1.msra.mxu0 0.0
  %568 = vmatprep.subr.mxu0 0.0
  %569 = vmatpush1.msra.mxu0 0.0
  %570 = vmatprep.subr.mxu0 0.0
  %571 = vmatpush1.msra.mxu0 0.0
  %572 = vmatprep.subr.mxu0 0.0
  %573 = vmatpush1.msra.mxu0 0.0
  %574 = vmatprep.subr.mxu0 0.0
  %575 = vmatpush1.msra.mxu0 %v537
  %576 = vmatprep.subr.mxu0 0.0
  %577 = vmatpush2.msra.mxu0 0.0
  %578 = vmatprep.subr.mxu0 0.0
  %579 = vmatpush2.msra.mxu0 0.0
  %580 = vmatprep.subr.mxu0 0.0
  %581 = vmatpush2.msra.mxu0 0.0
  %582 = vmatprep.subr.mxu0 0.0
  %583 = vmatpush2.msra.mxu0 0.0
  %584 = vmatprep.subr.mxu0 0.0
  %585 = vmatpush2.msra.mxu0 0.0
  %586 = vmatprep.subr.mxu0 0.0
  %587 = vmatpush2.msra.mxu0 0.0
  %588 = vmatprep.subr.mxu0 0.0
  %589 = vmatpush2.msra.mxu0 0.0
  %590 = vmatprep.subr.mxu0 0.0
  %591 = vmatpush2.msra.mxu0 0.0
  %592 = vmatprep.subr.mxu0 0.0
  %593 = vmatpush2.msra.mxu0 0.0
  %594 = vmatprep.subr.mxu0 0.0
  %595 = vmatpush2.msra.mxu0 0.0
  %596 = vmatprep.subr.mxu0 0.0
  %597 = vmatpush2.msra.mxu0 0.0
  %598 = vmatprep.subr.mxu0 0.0
  %599 = vmatpush2.msra.mxu0 0.0
  %600 = vmatprep.subr.mxu0 0.0
  %601 = vmatpush2.msra.mxu0 0.0
  %602 = vmatprep.subr.mxu0 0.0
  %603 = vmatpush2.msra.mxu0 0.0
  %604 = vmatprep.subr.mxu0 0.0
  %605 = vmatpush2.msra.mxu0 0.0
  %606 = vmatprep.subr.mxu0 0.0
  %607 = vmatpush2.msra.mxu0 0.0
  %608 = vmatprep.mubr.f32.mxu0 0.0
  %609 = vmatmul.mubr.f32.gmra.mxu0 %v542
  %v610 = vpop.f32.mrf.mxu0
  %v611 = vadd.f32 %v540, %v610
  %v612 = vpop.f32.mrf.mxu0
  %613 = vdwg.mxu0
  %615 = vrot.lane.b32.xlu0 %v611, 56
  %v616 = vpop.permute.xlu0 %615
  %vm618 = vcmask 523712
  %619 = vst.msk [vmem:[#allocation2] sm:$0xff] %vm618, %v616
  %v620 = vld [vmem:[#allocation2] sm:$0xff]
  %v621 = vld [vmem:[%s1] sm:$0xff]
  %v622 = vld [vmem:[%s1 + $0x8] sm:$0xff]
  %v623 = vld [vmem:[%s1 + $0x10] sm:$0xff]
  %v624 = vld [vmem:[%s1 + $0x18] sm:$0xff]
  %v625 = vld [vmem:[%s1 + $0x20] sm:$0xff]
  %v626 = vld [vmem:[%s1 + $0x28] sm:$0xff]
  %v627 = vld [vmem:[%s1 + $0x30] sm:$0xff]
  %v628 = vld [vmem:[%s1 + $0x38] sm:$0xff]
  %v629 = vld [vmem:[%s0 + $0x8] sm:$0xff]
  %v630 = vld [vmem:[%s0 + $0x10] sm:$0xff]
  %633 = vrot.lane.b32.xlu0 %v629, 24
  %v634 = vpop.permute.xlu0 %633
  %635 = vrot.lane.b32.xlu0 %v630, 24
  %v636 = vpop.permute.xlu0 %635
  %vm637 = vcmask 195584
  %v638 = vsel %vm637, %v634, %v636
  %vm640 = vcmask 523264
  %v642 = vsel %vm640, %v620, 0
  %644 = vmatprep.subr.mxu0 0.0
  %645 = vmatpush1.msra.mxu0 0.0
  %646 = vmatprep.subr.mxu0 0.0
  %647 = vmatpush1.msra.mxu0 0.0
  %648 = vmatprep.subr.mxu0 0.0
  %649 = vmatpush1.msra.mxu0 0.0
  %650 = vmatprep.subr.mxu0 0.0
  %651 = vmatpush1.msra.mxu0 0.0
  %652 = vmatprep.subr.mxu0 0.0
  %653 = vmatpush1.msra.mxu0 0.0
  %654 = vmatprep.subr.mxu0 0.0
  %655 = vmatpush1.msra.mxu0 0.0
  %656 = vmatprep.subr.mxu0 0.0
  %657 = vmatpush1.msra.mxu0 0.0
  %658 = vmatprep.subr.mxu0 0.0
  %659 = vmatpush1.msra.mxu0 0.0
  %660 = vmatprep.subr.mxu0 0.0
  %661 = vmatpush1.msra.mxu0 %v628
  %662 = vmatprep.subr.mxu0 0.0
  %663 = vmatpush1.msra.mxu0 %v627
  %664 = vmatprep.subr.mxu0 0.0
  %665 = vmatpush1.msra.mxu0 %v626
  %666 = vmatprep.subr.mxu0 0.0
  %667 = vmatpush1.msra.mxu0 %v625
  %668 = vmatprep.subr.mxu0 0.0
  %669 = vmatpush1.msra.mxu0 %v624
  %670 = vmatprep.subr.mxu0 0.0
  %671 = vmatpush1.msra.mxu0 %v623
  %672 = vmatprep.subr.mxu0 0.0
  %673 = vmatpush1.msra.mxu0 %v622
  %674 = vmatprep.subr.mxu0 0.0
  %675 = vmatpush1.msra.mxu0 %v621
  %676 = vmatprep.subr.mxu0 0.0
  %677 = vmatpush2.msra.mxu0 0.0
  %678 = vmatprep.subr.mxu0 0.0
  %679 = vmatpush2.msra.mxu0 0.0
  %680 = vmatprep.subr.mxu0 0.0
  %681 = vmatpush2.msra.mxu0 0.0
  %682 = vmatprep.subr.mxu0 0.0
  %683 = vmatpush2.msra.mxu0 0.0
  %684 = vmatprep.subr.mxu0 0.0
  %685 = vmatpush2.msra.mxu0 0.0
  %686 = vmatprep.subr.mxu0 0.0
  %687 = vmatpush2.msra.mxu0 0.0
  %688 = vmatprep.subr.mxu0 0.0
  %689 = vmatpush2.msra.mxu0 0.0
  %690 = vmatprep.subr.mxu0 0.0
  %691 = vmatpush2.msra.mxu0 0.0
  %692 = vmatprep.subr.mxu0 0.0
  %693 = vmatpush2.msra.mxu0 0.0
  %694 = vmatprep.subr.mxu0 0.0
  %695 = vmatpush2.msra.mxu0 0.0
  %696 = vmatprep.subr.mxu0 0.0
  %697 = vmatpush2.msra.mxu0 0.0
  %698 = vmatprep.subr.mxu0 0.0
  %699 = vmatpush2.msra.mxu0 0.0
  %700 = vmatprep.subr.mxu0 0.0
  %701 = vmatpush2.msra.mxu0 0.0
  %702 = vmatprep.subr.mxu0 0.0
  %703 = vmatpush2.msra.mxu0 0.0
  %704 = vmatprep.subr.mxu0 0.0
  %705 = vmatpush2.msra.mxu0 0.0
  %706 = vmatprep.subr.mxu0 0.0
  %707 = vmatpush2.msra.mxu0 0.0
  %708 = vmatprep.mubr.f32.mxu0 0.0
  %709 = vmatmul.mubr.f32.gmra.mxu0 %v642
  %v710 = vpop.f32.mrf.mxu0
  %v711 = vadd.f32 %v638, %v710
  %v712 = vpop.f32.mrf.mxu0
  %713 = vdwg.mxu0
  %715 = vrot.lane.b32.xlu0 %v711, 64
  %v716 = vpop.permute.xlu0 %715
  %vm718 = vcmask 785920
  %719 = vst.msk [vmem:[#allocation2] sm:$0xff] %vm718, %v716
  %vm720 = vcmask 1048320
  %721 = vst.msk [vmem:[#allocation2] sm:$0xff] %vm720, 0.0
  %vm722 = vcmask 794368
  %723 = vst.msk [vmem:[#allocation2] sm:$0xff] %vm722, 1.0
  %v724 = vld [vmem:[#allocation2] sm:$0xff]
  %v725 = vld [vmem:[%s0 + $0x10] sm:$0xff]
  %v726 = vld [vmem:[%s0 + $0x18] sm:$0xff]
  %v727 = vld [vmem:[%s2] sm:$0xff]
  %v728 = vld [vmem:[%s2 + $0x8] sm:$0xff]
  %v729 = vld [vmem:[%s2 + $0x10] sm:$0xff]
  %v730 = vld [vmem:[%s2 + $0x18] sm:$0xff]
  %v731 = vld [vmem:[%s2 + $0x20] sm:$0xff]
  %v732 = vld [vmem:[%s2 + $0x28] sm:$0xff]
  %v733 = vld [vmem:[%s2 + $0x30] sm:$0xff]
  %v734 = vld [vmem:[%s2 + $0x38] sm:$0xff]
  %v735 = vld [vmem:[%s2 + $0x40] sm:$0xff]
  %v736 = vld [vmem:[%s2 + $0x48] sm:$0xff]
  %v737 = vld [vmem:[%s2 + $0x50] sm:$0xff]
  %v738 = vld [vmem:[%s2 + $0x58] sm:$0xff]
  %v739 = vld [vmem:[%s2 + $0x60] sm:$0xff]
  %v740 = vld [vmem:[%s2 + $0x68] sm:$0xff]
  %v741 = vld [vmem:[%s2 + $0x70] sm:$0xff]
  %v742 = vld [vmem:[%s2 + $0x78] sm:$0xff]
  %v743 = vld [vmem:[%s2 + $0x80] sm:$0xff]
  %v744 = vld [vmem:[%s2 + $0x88] sm:$0xff]
  %v745 = vld [vmem:[%s2 + $0x90] sm:$0xff]
  %v746 = vld [vmem:[%s2 + $0x98] sm:$0xff]
  %v747 = vld [vmem:[%s2 + $0xa0] sm:$0xff]
  %v748 = vld [vmem:[%s2 + $0xa8] sm:$0xff]
  %v749 = vld [vmem:[%s2 + $0xb0] sm:$0xff]
  %v750 = vld [vmem:[%s2 + $0xb8] sm:$0xff]
  %753 = vrot.lane.b32.xlu0 %v725, 120
  %v754 = vpop.permute.xlu0 %753
  %755 = vrot.lane.b32.xlu0 %v726, 120
  %v756 = vpop.permute.xlu0 %755
  %vm757 = vcmask 982016
  %v758 = vsel %vm757, %v754, %v756
  %vm761 = vcmask 785408
  %v763 = vsel %vm761, %v724, 0
  %765 = vmatprep.subr.mxu0 0.0
  %766 = vmatpush1.msra.mxu0 0.0
  %767 = vmatprep.subr.mxu0 0.0
  %768 = vmatpush1.msra.mxu0 0.0
  %769 = vmatprep.subr.mxu0 0.0
  %770 = vmatpush1.msra.mxu0 0.0
  %771 = vmatprep.subr.mxu0 0.0
  %772 = vmatpush1.msra.mxu0 0.0
  %773 = vmatprep.subr.mxu0 %v750
  %774 = vmatpush1.msra.mxu0 %v749
  %775 = vmatprep.subr.mxu0 %v748
  %776 = vmatpush1.msra.mxu0 %v747
  %777 = vmatprep.subr.mxu0 %v746
  %778 = vmatpush1.msra.mxu0 %v745
  %779 = vmatprep.subr.mxu0 %v744
  %780 = vmatpush1.msra.mxu0 %v743
  %781 = vmatprep.subr.mxu0 %v742
  %782 = vmatpush1.msra.mxu0 %v741
  %783 = vmatprep.subr.mxu0 %v740
  %784 = vmatpush1.msra.mxu0 %v739
  %785 = vmatprep.subr.mxu0 %v738
  %786 = vmatpush1.msra.mxu0 %v737
  %787 = vmatprep.subr.mxu0 %v736
  %788 = vmatpush1.msra.mxu0 %v735
  %789 = vmatprep.subr.mxu0 %v734
  %790 = vmatpush1.msra.mxu0 %v733
  %791 = vmatprep.subr.mxu0 %v732
  %792 = vmatpush1.msra.mxu0 %v731
  %793 = vmatprep.subr.mxu0 %v730
  %794 = vmatpush1.msra.mxu0 %v729
  %795 = vmatprep.subr.mxu0 %v728
  %796 = vmatpush1.msra.mxu0 %v727
  %797 = vmatprep.subr.mxu0 0.0
  %798 = vmatpush2.msra.mxu0 0.0
  %799 = vmatprep.subr.mxu0 0.0
  %800 = vmatpush2.msra.mxu0 0.0
  %801 = vmatprep.subr.mxu0 0.0
  %802 = vmatpush2.msra.mxu0 0.0
  %803 = vmatprep.subr.mxu0 0.0
  %804 = vmatpush2.msra.mxu0 0.0
  %805 = vmatprep.subr.mxu0 0.0
  %806 = vmatpush2.msra.mxu0 0.0
  %807 = vmatprep.subr.mxu0 0.0
  %808 = vmatpush2.msra.mxu0 0.0
  %809 = vmatprep.subr.mxu0 0.0
  %810 = vmatpush2.msra.mxu0 0.0
  %811 = vmatprep.subr.mxu0 0.0
  %812 = vmatpush2.msra.mxu0 0.0
  %813 = vmatprep.subr.mxu0 0.0
  %814 = vmatpush2.msra.mxu0 0.0
  %815 = vmatprep.subr.mxu0 0.0
  %816 = vmatpush2.msra.mxu0 0.0
  %817 = vmatprep.subr.mxu0 0.0
  %818 = vmatpush2.msra.mxu0 0.0
  %819 = vmatprep.subr.mxu0 0.0
  %820 = vmatpush2.msra.mxu0 0.0
  %821 = vmatprep.subr.mxu0 0.0
  %822 = vmatpush2.msra.mxu0 0.0
  %823 = vmatprep.subr.mxu0 0.0
  %824 = vmatpush2.msra.mxu0 0.0
  %825 = vmatprep.subr.mxu0 0.0
  %826 = vmatpush2.msra.mxu0 0.0
  %827 = vmatprep.subr.mxu0 0.0
  %828 = vmatpush2.msra.mxu0 0.0
  %829 = vmatprep.mubr.f32.mxu0 0.0
  %830 = vmatmul.mubr.f32.gmra.mxu0 %v763
  %v831 = vpop.f32.mrf.mxu0
  %v832 = vadd.f32 %v758, %v831
  %v833 = vpop.f32.mrf.mxu0
  %v834 = vadd.f32 %v756, %v833
  %835 = vdwg.mxu0
  %v837 = vadd.f32 %v832, %v754
  %v838 = vmul.f32 %v837, 0.5
  %v839 = vmul.f32 %v724, %v838
  %v840 = vsel %vm761, %v839, 0.0
  %841 = vadd.xlane.f32.xlu0 %v840
  %v842 = vpop.xlane.xlu0 %841
  %843 = vst.msk [vmem:[#allocation3] sm:$0xff] %vm360, 0.0
  %vm844 = vcmask 269568
  %845 = vst.msk [vmem:[#allocation3] sm:$0xff] %vm844, %v842
  %v846 = vsub.f32 0.0, %v832
  %848 = vrot.lane.b32.xlu0 %v846, 64
  %v849 = vpop.permute.xlu0 %848
  %vm851 = vcmask 261344
  %852 = vst.msk [vmem:[#allocation3] sm:$0xff] %vm851, %v849
  %v853 = vld [vmem:[%s0 + $0x8] sm:$0xff]
  %855 = vrot.lane.b32.xlu0 %v834, 104
  %v856 = vpop.permute.xlu0 %855
  %858 = vrot.lane.b32.xlu0 %v853, 56
  %v859 = vpop.permute.xlu0 %858
  %v861 = vsel %vm19, %v856, 0
  %863 = vmatprep.subr.mxu0 0.0
  %864 = vmatpush1.msra.mxu0 0.0
  %865 = vmatprep.subr.mxu0 0.0
  %866 = vmatpush1.msra.mxu0 0.0
  %867 = vmatprep.subr.mxu0 0.0
  %868 = vmatpush1.msra.mxu0 0.0
  %869 = vmatprep.subr.mxu0 0.0
  %870 = vmatpush1.msra.mxu0 0.0
  %871 = vmatprep.subr.mxu0 0.0
  %872 = vmatpush1.msra.mxu0 0.0
  %873 = vmatprep.subr.mxu0 0.0
  %874 = vmatpush1.msra.mxu0 0.0
  %875 = vmatprep.subr.mxu0 0.0
  %876 = vmatpush1.msra.mxu0 0.0
  %877 = vmatprep.subr.mxu0 0.0
  %878 = vmatpush1.msra.mxu0 0.0
  %879 = vmatprep.subr.mxu0 0.0
  %880 = vmatpush1.msra.mxu0 0.0
  %881 = vmatprep.subr.mxu0 0.0
  %882 = vmatpush1.msra.mxu0 0.0
  %883 = vmatprep.subr.mxu0 0.0
  %884 = vmatpush1.msra.mxu0 0.0
  %885 = vmatprep.subr.mxu0 0.0
  %886 = vmatpush1.msra.mxu0 0.0
  %887 = vmatprep.subr.mxu0 0.0
  %888 = vmatpush1.msra.mxu0 0.0
  %889 = vmatprep.subr.mxu0 0.0
  %890 = vmatpush1.msra.mxu0 0.0
  %891 = vmatprep.subr.mxu0 0.0
  %892 = vmatpush1.msra.mxu0 0.0
  %893 = vmatprep.subr.mxu0 0.0
  %894 = vmatpush1.msra.mxu0 %v859
  %895 = vmatprep.subr.mxu0 0.0
  %896 = vmatpush2.msra.mxu0 0.0
  %897 = vmatprep.subr.mxu0 0.0
  %898 = vmatpush2.msra.mxu0 0.0
  %899 = vmatprep.subr.mxu0 0.0
  %900 = vmatpush2.msra.mxu0 0.0
  %901 = vmatprep.subr.mxu0 0.0
  %902 = vmatpush2.msra.mxu0 0.0
  %903 = vmatprep.subr.mxu0 0.0
  %904 = vmatpush2.msra.mxu0 0.0
  %905 = vmatprep.subr.mxu0 0.0
  %906 = vmatpush2.msra.mxu0 0.0
  %907 = vmatprep.subr.mxu0 0.0
  %908 = vmatpush2.msra.mxu0 0.0
  %909 = vmatprep.subr.mxu0 0.0
  %910 = vmatpush2.msra.mxu0 0.0
  %911 = vmatprep.subr.mxu0 0.0
  %912 = vmatpush2.msra.mxu0 0.0
  %913 = vmatprep.subr.mxu0 0.0
  %914 = vmatpush2.msra.mxu0 0.0
  %915 = vmatprep.subr.mxu0 0.0
  %916 = vmatpush2.msra.mxu0 0.0
  %917 = vmatprep.subr.mxu0 0.0
  %918 = vmatpush2.msra.mxu0 0.0
  %919 = vmatprep.subr.mxu0 0.0
  %920 = vmatpush2.msra.mxu0 0.0
  %921 = vmatprep.subr.mxu0 0.0
  %922 = vmatpush2.msra.mxu0 0.0
  %923 = vmatprep.subr.mxu0 0.0
  %924 = vmatpush2.msra.mxu0 0.0
  %925 = vmatprep.subr.mxu0 0.0
  %926 = vmatpush2.msra.mxu0 0.0
  %927 = vmatprep.mubr.f32.mxu0 0.0
  %928 = vmatmul.mubr.f32.gmra.mxu0 %v861
  %v929 = vpop.f32.mrf.mxu0
  %v930 = vadd.f32 0.0, %v929
  %v931 = vpop.f32.mrf.mxu0
  %932 = vdwg.mxu0
  %934 = vrot.lane.b32.xlu0 %v832, 48
  %v935 = vpop.permute.xlu0 %934
  %v937 = vsub.f32 %v930, %v935
  %939 = vrot.lane.b32.xlu0 %v937, 16
  %v940 = vpop.permute.xlu0 %939
  %vm942 = vcmask 228544
  %943 = vst.msk [vmem:[#allocation3] sm:$0xff] %vm942, %v940
  %944 = vrot.lane.b32.xlu0 %v834, 112
  %v945 = vpop.permute.xlu0 %944
  %v947 = vadd.f32 %v930, %v945
  %v948 = vld [vmem:[%s0 + $0x8] sm:$0xff]
  %950 = vrot.lane.b32.xlu0 %v948, 68
  %v951 = vpop.permute.xlu0 %950
  %v954 = vsel %vm19, %v947, 0
  %956 = vmatprep.subr.mxu0 0.0
  %957 = vmatpush1.msra.mxu0 0.0
  %958 = vmatprep.subr.mxu0 0.0
  %959 = vmatpush1.msra.mxu0 0.0
  %960 = vmatprep.subr.mxu0 0.0
  %961 = vmatpush1.msra.mxu0 0.0
  %962 = vmatprep.subr.mxu0 0.0
  %963 = vmatpush1.msra.mxu0 0.0
  %964 = vmatprep.subr.mxu0 0.0
  %965 = vmatpush1.msra.mxu0 0.0
  %966 = vmatprep.subr.mxu0 0.0
  %967 = vmatpush1.msra.mxu0 0.0
  %968 = vmatprep.subr.mxu0 0.0
  %969 = vmatpush1.msra.mxu0 0.0
  %970 = vmatprep.subr.mxu0 0.0
  %971 = vmatpush1.msra.mxu0 0.0
  %972 = vmatprep.subr.mxu0 0.0
  %973 = vmatpush1.msra.mxu0 0.0
  %974 = vmatprep.subr.mxu0 0.0
  %975 = vmatpush1.msra.mxu0 0.0
  %976 = vmatprep.subr.mxu0 0.0
  %977 = vmatpush1.msra.mxu0 0.0
  %978 = vmatprep.subr.mxu0 0.0
  %979 = vmatpush1.msra.mxu0 0.0
  %980 = vmatprep.subr.mxu0 0.0
  %981 = vmatpush1.msra.mxu0 0.0
  %982 = vmatprep.subr.mxu0 0.0
  %983 = vmatpush1.msra.mxu0 0.0
  %984 = vmatprep.subr.mxu0 0.0
  %985 = vmatpush1.msra.mxu0 0.0
  %986 = vmatprep.subr.mxu0 0.0
  %987 = vmatpush1.msra.mxu0 %v951
  %988 = vmatprep.subr.mxu0 0.0
  %989 = vmatpush2.msra.mxu0 0.0
  %990 = vmatprep.subr.mxu0 0.0
  %991 = vmatpush2.msra.mxu0 0.0
  %992 = vmatprep.subr.mxu0 0.0
  %993 = vmatpush2.msra.mxu0 0.0
  %994 = vmatprep.subr.mxu0 0.0
  %995 = vmatpush2.msra.mxu0 0.0
  %996 = vmatprep.subr.mxu0 0.0
  %997 = vmatpush2.msra.mxu0 0.0
  %998 = vmatprep.subr.mxu0 0.0
  %999 = vmatpush2.msra.mxu0 0.0
  %1000 = vmatprep.subr.mxu0 0.0
  %1001 = vmatpush2.msra.mxu0 0.0
  %1002 = vmatprep.subr.mxu0 0.0
  %1003 = vmatpush2.msra.mxu0 0.0
  %1004 = vmatprep.subr.mxu0 0.0
  %1005 = vmatpush2.msra.mxu0 0.0
  %1006 = vmatprep.subr.mxu0 0.0
  %1007 = vmatpush2.msra.mxu0 0.0
  %1008 = vmatprep.subr.mxu0 0.0
  %1009 = vmatpush2.msra.mxu0 0.0
  %1010 = vmatprep.subr.mxu0 0.0
  %1011 = vmatpush2.msra.mxu0 0.0
  %1012 = vmatprep.subr.mxu0 0.0
  %1013 = vmatpush2.msra.mxu0 0.0
  %1014 = vmatprep.subr.mxu0 0.0
  %1015 = vmatpush2.msra.mxu0 0.0
  %1016 = vmatprep.subr.mxu0 0.0
  %1017 = vmatpush2.msra.mxu0 0.0
  %1018 = vmatprep.subr.mxu0 0.0
  %1019 = vmatpush2.msra.mxu0 0.0
  %1020 = vmatprep.mubr.f32.mxu0 0.0
  %1021 = vmatmul.mubr.f32.gmra.mxu0 %v954
  %v1022 = vpop.f32.mrf.mxu0
  %v1023 = vadd.f32 0.0, %v1022
  %v1024 = vpop.f32.mrf.mxu0
  %1025 = vdwg.mxu0
  %1026 = vrot.lane.b32.xlu0 %v832, 52
  %v1027 = vpop.permute.xlu0 %1026
  %v1029 = vsub.f32 %v1023, %v1027
  %1031 = vrot.lane.b32.xlu0 %v1029, 12
  %v1032 = vpop.permute.xlu0 %1031
  %vm1034 = vcmask 195744
  %1035 = vst.msk [vmem:[#allocation3] sm:$0xff] %vm1034, %v1032
  %1036 = vrot.lane.b32.xlu0 %v834, 120
  %v1037 = vpop.permute.xlu0 %1036
  %v1039 = vadd.f32 %v1023, %v1037
  %v1040 = vld [vmem:[%s0 + $0x8] sm:$0xff]
  %1042 = vrot.lane.b32.xlu0 %v1040, 80
  %v1043 = vpop.permute.xlu0 %1042
  %v1046 = vsel %vm19, %v1039, 0
  %1048 = vmatprep.subr.mxu0 0.0
  %1049 = vmatpush1.msra.mxu0 0.0
  %1050 = vmatprep.subr.mxu0 0.0
  %1051 = vmatpush1.msra.mxu0 0.0
  %1052 = vmatprep.subr.mxu0 0.0
  %1053 = vmatpush1.msra.mxu0 0.0
  %1054 = vmatprep.subr.mxu0 0.0
  %1055 = vmatpush1.msra.mxu0 0.0
  %1056 = vmatprep.subr.mxu0 0.0
  %1057 = vmatpush1.msra.mxu0 0.0
  %1058 = vmatprep.subr.mxu0 0.0
  %1059 = vmatpush1.msra.mxu0 0.0
  %1060 = vmatprep.subr.mxu0 0.0
  %1061 = vmatpush1.msra.mxu0 0.0
  %1062 = vmatprep.subr.mxu0 0.0
  %1063 = vmatpush1.msra.mxu0 0.0
  %1064 = vmatprep.subr.mxu0 0.0
  %1065 = vmatpush1.msra.mxu0 0.0
  %1066 = vmatprep.subr.mxu0 0.0
  %1067 = vmatpush1.msra.mxu0 0.0
  %1068 = vmatprep.subr.mxu0 0.0
  %1069 = vmatpush1.msra.mxu0 0.0
  %1070 = vmatprep.subr.mxu0 0.0
  %1071 = vmatpush1.msra.mxu0 0.0
  %1072 = vmatprep.subr.mxu0 0.0
  %1073 = vmatpush1.msra.mxu0 0.0
  %1074 = vmatprep.subr.mxu0 0.0
  %1075 = vmatpush1.msra.mxu0 0.0
  %1076 = vmatprep.subr.mxu0 0.0
  %1077 = vmatpush1.msra.mxu0 0.0
  %1078 = vmatprep.subr.mxu0 0.0
  %1079 = vmatpush1.msra.mxu0 %v1043
  %1080 = vmatprep.subr.mxu0 0.0
  %1081 = vmatpush2.msra.mxu0 0.0
  %1082 = vmatprep.subr.mxu0 0.0
  %1083 = vmatpush2.msra.mxu0 0.0
  %1084 = vmatprep.subr.mxu0 0.0
  %1085 = vmatpush2.msra.mxu0 0.0
  %1086 = vmatprep.subr.mxu0 0.0
  %1087 = vmatpush2.msra.mxu0 0.0
  %1088 = vmatprep.subr.mxu0 0.0
  %1089 = vmatpush2.msra.mxu0 0.0
  %1090 = vmatprep.subr.mxu0 0.0
  %1091 = vmatpush2.msra.mxu0 0.0
  %1092 = vmatprep.subr.mxu0 0.0
  %1093 = vmatpush2.msra.mxu0 0.0
  %1094 = vmatprep.subr.mxu0 0.0
  %1095 = vmatpush2.msra.mxu0 0.0
  %1096 = vmatprep.subr.mxu0 0.0
  %1097 = vmatpush2.msra.mxu0 0.0
  %1098 = vmatprep.subr.mxu0 0.0
  %1099 = vmatpush2.msra.mxu0 0.0
  %1100 = vmatprep.subr.mxu0 0.0
  %1101 = vmatpush2.msra.mxu0 0.0
  %1102 = vmatprep.subr.mxu0 0.0
  %1103 = vmatpush2.msra.mxu0 0.0
  %1104 = vmatprep.subr.mxu0 0.0
  %1105 = vmatpush2.msra.mxu0 0.0
  %1106 = vmatprep.subr.mxu0 0.0
  %1107 = vmatpush2.msra.mxu0 0.0
  %1108 = vmatprep.subr.mxu0 0.0
  %1109 = vmatpush2.msra.mxu0 0.0
  %1110 = vmatprep.subr.mxu0 0.0
  %1111 = vmatpush2.msra.mxu0 0.0
  %1112 = vmatprep.mubr.f32.mxu0 0.0
  %1113 = vmatmul.mubr.f32.gmra.mxu0 %v1046
  %v1114 = vpop.f32.mrf.mxu0
  %v1115 = vadd.f32 0.0, %v1114
  %v1116 = vpop.f32.mrf.mxu0
  %1117 = vdwg.mxu0
  %1118 = vrot.lane.b32.xlu0 %v832, 56
  %v1119 = vpop.permute.xlu0 %1118
  %v1121 = vsub.f32 %v1115, %v1119
  %1123 = vrot.lane.b32.xlu0 %v1121, 8
  %v1124 = vpop.permute.xlu0 %1123
  %vm1126 = vcmask 162944
  %1127 = vst.msk [vmem:[#allocation3] sm:$0xff] %vm1126, %v1124
  %v1128 = vadd.f32 %v1115, %v834
  %v1129 = vld [vmem:[%s0 + $0x8] sm:$0xff]
  %1131 = vrot.lane.b32.xlu0 %v1129, 92
  %v1132 = vpop.permute.xlu0 %1131
  %v1135 = vsel %vm19, %v1128, 0
  %1137 = vmatprep.subr.mxu0 0.0
  %1138 = vmatpush1.msra.mxu0 0.0
  %1139 = vmatprep.subr.mxu0 0.0
  %1140 = vmatpush1.msra.mxu0 0.0
  %1141 = vmatprep.subr.mxu0 0.0
  %1142 = vmatpush1.msra.mxu0 0.0
  %1143 = vmatprep.subr.mxu0 0.0
  %1144 = vmatpush1.msra.mxu0 0.0
  %1145 = vmatprep.subr.mxu0 0.0
  %1146 = vmatpush1.msra.mxu0 0.0
  %1147 = vmatprep.subr.mxu0 0.0
  %1148 = vmatpush1.msra.mxu0 0.0
  %1149 = vmatprep.subr.mxu0 0.0
  %1150 = vmatpush1.msra.mxu0 0.0
  %1151 = vmatprep.subr.mxu0 0.0
  %1152 = vmatpush1.msra.mxu0 0.0
  %1153 = vmatprep.subr.mxu0 0.0
  %1154 = vmatpush1.msra.mxu0 0.0
  %1155 = vmatprep.subr.mxu0 0.0
  %1156 = vmatpush1.msra.mxu0 0.0
  %1157 = vmatprep.subr.mxu0 0.0
  %1158 = vmatpush1.msra.mxu0 0.0
  %1159 = vmatprep.subr.mxu0 0.0
  %1160 = vmatpush1.msra.mxu0 0.0
  %1161 = vmatprep.subr.mxu0 0.0
  %1162 = vmatpush1.msra.mxu0 0.0
  %1163 = vmatprep.subr.mxu0 0.0
  %1164 = vmatpush1.msra.mxu0 0.0
  %1165 = vmatprep.subr.mxu0 0.0
  %1166 = vmatpush1.msra.mxu0 0.0
  %1167 = vmatprep.subr.mxu0 0.0
  %1168 = vmatpush1.msra.mxu0 %v1132
  %1169 = vmatprep.subr.mxu0 0.0
  %1170 = vmatpush2.msra.mxu0 0.0
  %1171 = vmatprep.subr.mxu0 0.0
  %1172 = vmatpush2.msra.mxu0 0.0
  %1173 = vmatprep.subr.mxu0 0.0
  %1174 = vmatpush2.msra.mxu0 0.0
  %1175 = vmatprep.subr.mxu0 0.0
  %1176 = vmatpush2.msra.mxu0 0.0
  %1177 = vmatprep.subr.mxu0 0.0
  %1178 = vmatpush2.msra.mxu0 0.0
  %1179 = vmatprep.subr.mxu0 0.0
  %1180 = vmatpush2.msra.mxu0 0.0
  %1181 = vmatprep.subr.mxu0 0.0
  %1182 = vmatpush2.msra.mxu0 0.0
  %1183 = vmatprep.subr.mxu0 0.0
  %1184 = vmatpush2.msra.mxu0 0.0
  %1185 = vmatprep.subr.mxu0 0.0
  %1186 = vmatpush2.msra.mxu0 0.0
  %1187 = vmatprep.subr.mxu0 0.0
  %1188 = vmatpush2.msra.mxu0 0.0
  %1189 = vmatprep.subr.mxu0 0.0
  %1190 = vmatpush2.msra.mxu0 0.0
  %1191 = vmatprep.subr.mxu0 0.0
  %1192 = vmatpush2.msra.mxu0 0.0
  %1193 = vmatprep.subr.mxu0 0.0
  %1194 = vmatpush2.msra.mxu0 0.0
  %1195 = vmatprep.subr.mxu0 0.0
  %1196 = vmatpush2.msra.mxu0 0.0
  %1197 = vmatprep.subr.mxu0 0.0
  %1198 = vmatpush2.msra.mxu0 0.0
  %1199 = vmatprep.subr.mxu0 0.0
  %1200 = vmatpush2.msra.mxu0 0.0
  %1201 = vmatprep.mubr.f32.mxu0 0.0
  %1202 = vmatmul.mubr.f32.gmra.mxu0 %v1135
  %v1203 = vpop.f32.mrf.mxu0
  %v1204 = vadd.f32 0.0, %v1203
  %v1205 = vpop.f32.mrf.mxu0
  %1206 = vdwg.mxu0
  %1207 = vrot.lane.b32.xlu0 %v832, 60
  %v1208 = vpop.permute.xlu0 %1207
  %v1210 = vsub.f32 %v1204, %v1208
  %1212 = vrot.lane.b32.xlu0 %v1210, 4
  %v1213 = vpop.permute.xlu0 %1212
  %vm1215 = vcmask 130144
  %1216 = vst.msk [vmem:[#allocation3] sm:$0xff] %vm1215, %v1213
  %1217 = vrot.lane.b32.xlu0 %v832, 8
  %v1218 = vpop.permute.xlu0 %1217
  %v1220 = vadd.f32 %v1204, %v1218
  %v1221 = vld [vmem:[%s0 + $0x8] sm:$0xff]
  %1223 = vrot.lane.b32.xlu0 %v1221, 104
  %v1224 = vpop.permute.xlu0 %1223
  %v1227 = vsel %vm19, %v1220, 0
  %1229 = vmatprep.subr.mxu0 0.0
  %1230 = vmatpush1.msra.mxu0 0.0
  %1231 = vmatprep.subr.mxu0 0.0
  %1232 = vmatpush1.msra.mxu0 0.0
  %1233 = vmatprep.subr.mxu0 0.0
  %1234 = vmatpush1.msra.mxu0 0.0
  %1235 = vmatprep.subr.mxu0 0.0
  %1236 = vmatpush1.msra.mxu0 0.0
  %1237 = vmatprep.subr.mxu0 0.0
  %1238 = vmatpush1.msra.mxu0 0.0
  %1239 = vmatprep.subr.mxu0 0.0
  %1240 = vmatpush1.msra.mxu0 0.0
  %1241 = vmatprep.subr.mxu0 0.0
  %1242 = vmatpush1.msra.mxu0 0.0
  %1243 = vmatprep.subr.mxu0 0.0
  %1244 = vmatpush1.msra.mxu0 0.0
  %1245 = vmatprep.subr.mxu0 0.0
  %1246 = vmatpush1.msra.mxu0 0.0
  %1247 = vmatprep.subr.mxu0 0.0
  %1248 = vmatpush1.msra.mxu0 0.0
  %1249 = vmatprep.subr.mxu0 0.0
  %1250 = vmatpush1.msra.mxu0 0.0
  %1251 = vmatprep.subr.mxu0 0.0
  %1252 = vmatpush1.msra.mxu0 0.0
  %1253 = vmatprep.subr.mxu0 0.0
  %1254 = vmatpush1.msra.mxu0 0.0
  %1255 = vmatprep.subr.mxu0 0.0
  %1256 = vmatpush1.msra.mxu0 0.0
  %1257 = vmatprep.subr.mxu0 0.0
  %1258 = vmatpush1.msra.mxu0 0.0
  %1259 = vmatprep.subr.mxu0 0.0
  %1260 = vmatpush1.msra.mxu0 %v1224
  %1261 = vmatprep.subr.mxu0 0.0
  %1262 = vmatpush2.msra.mxu0 0.0
  %1263 = vmatprep.subr.mxu0 0.0
  %1264 = vmatpush2.msra.mxu0 0.0
  %1265 = vmatprep.subr.mxu0 0.0
  %1266 = vmatpush2.msra.mxu0 0.0
  %1267 = vmatprep.subr.mxu0 0.0
  %1268 = vmatpush2.msra.mxu0 0.0
  %1269 = vmatprep.subr.mxu0 0.0
  %1270 = vmatpush2.msra.mxu0 0.0
  %1271 = vmatprep.subr.mxu0 0.0
  %1272 = vmatpush2.msra.mxu0 0.0
  %1273 = vmatprep.subr.mxu0 0.0
  %1274 = vmatpush2.msra.mxu0 0.0
  %1275 = vmatprep.subr.mxu0 0.0
  %1276 = vmatpush2.msra.mxu0 0.0
  %1277 = vmatprep.subr.mxu0 0.0
  %1278 = vmatpush2.msra.mxu0 0.0
  %1279 = vmatprep.subr.mxu0 0.0
  %1280 = vmatpush2.msra.mxu0 0.0
  %1281 = vmatprep.subr.mxu0 0.0
  %1282 = vmatpush2.msra.mxu0 0.0
  %1283 = vmatprep.subr.mxu0 0.0
  %1284 = vmatpush2.msra.mxu0 0.0
  %1285 = vmatprep.subr.mxu0 0.0
  %1286 = vmatpush2.msra.mxu0 0.0
  %1287 = vmatprep.subr.mxu0 0.0
  %1288 = vmatpush2.msra.mxu0 0.0
  %1289 = vmatprep.subr.mxu0 0.0
  %1290 = vmatpush2.msra.mxu0 0.0
  %1291 = vmatprep.subr.mxu0 0.0
  %1292 = vmatpush2.msra.mxu0 0.0
  %1293 = vmatprep.mubr.f32.mxu0 0.0
  %1294 = vmatmul.mubr.f32.gmra.mxu0 %v1227
  %v1295 = vpop.f32.mrf.mxu0
  %v1296 = vadd.f32 0.0, %v1295
  %v1297 = vpop.f32.mrf.mxu0
  %1298 = vdwg.mxu0
  %1299 = vrot.lane.b32.xlu0 %v832, 64
  %v1300 = vpop.permute.xlu0 %1299
  %v1302 = vsub.f32 %v1296, %v1300
  %vm1303 = vcmask 97344
  %1304 = vst.msk [vmem:[#allocation3] sm:$0xff] %vm1303, %v1302
  %1305 = vrot.lane.b32.xlu0 %v832, 16
  %v1306 = vpop.permute.xlu0 %1305
  %v1308 = vadd.f32 %v1296, %v1306
  %v1309 = vld [vmem:[%s0 + $0x8] sm:$0xff]
  %1311 = vrot.lane.b32.xlu0 %v1309, 116
  %v1312 = vpop.permute.xlu0 %1311
  %v1315 = vsel %vm19, %v1308, 0
  %1317 = vmatprep.subr.mxu0 0.0
  %1318 = vmatpush1.msra.mxu0 0.0
  %1319 = vmatprep.subr.mxu0 0.0
  %1320 = vmatpush1.msra.mxu0 0.0
  %1321 = vmatprep.subr.mxu0 0.0
  %1322 = vmatpush1.msra.mxu0 0.0
  %1323 = vmatprep.subr.mxu0 0.0
  %1324 = vmatpush1.msra.mxu0 0.0
  %1325 = vmatprep.subr.mxu0 0.0
  %1326 = vmatpush1.msra.mxu0 0.0
  %1327 = vmatprep.subr.mxu0 0.0
  %1328 = vmatpush1.msra.mxu0 0.0
  %1329 = vmatprep.subr.mxu0 0.0
  %1330 = vmatpush1.msra.mxu0 0.0
  %1331 = vmatprep.subr.mxu0 0.0
  %1332 = vmatpush1.msra.mxu0 0.0
  %1333 = vmatprep.subr.mxu0 0.0
  %1334 = vmatpush1.msra.mxu0 0.0
  %1335 = vmatprep.subr.mxu0 0.0
  %1336 = vmatpush1.msra.mxu0 0.0
  %1337 = vmatprep.subr.mxu0 0.0
  %1338 = vmatpush1.msra.mxu0 0.0
  %1339 = vmatprep.subr.mxu0 0.0
  %1340 = vmatpush1.msra.mxu0 0.0
  %1341 = vmatprep.subr.mxu0 0.0
  %1342 = vmatpush1.msra.mxu0 0.0
  %1343 = vmatprep.subr.mxu0 0.0
  %1344 = vmatpush1.msra.mxu0 0.0
  %1345 = vmatprep.subr.mxu0 0.0
  %1346 = vmatpush1.msra.mxu0 0.0
  %1347 = vmatprep.subr.mxu0 0.0
  %1348 = vmatpush1.msra.mxu0 %v1312
  %1349 = vmatprep.subr.mxu0 0.0
  %1350 = vmatpush2.msra.mxu0 0.0
  %1351 = vmatprep.subr.mxu0 0.0
  %1352 = vmatpush2.msra.mxu0 0.0
  %1353 = vmatprep.subr.mxu0 0.0
  %1354 = vmatpush2.msra.mxu0 0.0
  %1355 = vmatprep.subr.mxu0 0.0
  %1356 = vmatpush2.msra.mxu0 0.0
  %1357 = vmatprep.subr.mxu0 0.0
  %1358 = vmatpush2.msra.mxu0 0.0
  %1359 = vmatprep.subr.mxu0 0.0
  %1360 = vmatpush2.msra.mxu0 0.0
  %1361 = vmatprep.subr.mxu0 0.0
  %1362 = vmatpush2.msra.mxu0 0.0
  %1363 = vmatprep.subr.mxu0 0.0
  %1364 = vmatpush2.msra.mxu0 0.0
  %1365 = vmatprep.subr.mxu0 0.0
  %1366 = vmatpush2.msra.mxu0 0.0
  %1367 = vmatprep.subr.mxu0 0.0
  %1368 = vmatpush2.msra.mxu0 0.0
  %1369 = vmatprep.subr.mxu0 0.0
  %1370 = vmatpush2.msra.mxu0 0.0
  %1371 = vmatprep.subr.mxu0 0.0
  %1372 = vmatpush2.msra.mxu0 0.0
  %1373 = vmatprep.subr.mxu0 0.0
  %1374 = vmatpush2.msra.mxu0 0.0
  %1375 = vmatprep.subr.mxu0 0.0
  %1376 = vmatpush2.msra.mxu0 0.0
  %1377 = vmatprep.subr.mxu0 0.0
  %1378 = vmatpush2.msra.mxu0 0.0
  %1379 = vmatprep.subr.mxu0 0.0
  %1380 = vmatpush2.msra.mxu0 0.0
  %1381 = vmatprep.mubr.f32.mxu0 0.0
  %1382 = vmatmul.mubr.f32.gmra.mxu0 %v1315
  %v1383 = vpop.f32.mrf.mxu0
  %v1384 = vadd.f32 0.0, %v1383
  %v1385 = vpop.f32.mrf.mxu0
  %1386 = vdwg.mxu0
  %1387 = vrot.lane.b32.xlu0 %v832, 68
  %v1388 = vpop.permute.xlu0 %1387
  %v1390 = vsub.f32 %v1384, %v1388
  %1392 = vrot.lane.b32.xlu0 %v1390, 124
  %v1393 = vpop.permute.xlu0 %1392
  %vm1395 = vcmask 64544
  %1396 = vst.msk [vmem:[#allocation3] sm:$0xff] %vm1395, %v1393
  %1397 = vrot.lane.b32.xlu0 %v832, 24
  %v1398 = vpop.permute.xlu0 %1397
  %v1400 = vadd.f32 %v1384, %v1398
  %v1401 = vld [vmem:[%s0 + $0x8] sm:$0xff]
  %v1403 = vsel %vm19, %v1400, 0
  %1405 = vmatprep.subr.mxu0 0.0
  %1406 = vmatpush1.msra.mxu0 0.0
  %1407 = vmatprep.subr.mxu0 0.0
  %1408 = vmatpush1.msra.mxu0 0.0
  %1409 = vmatprep.subr.mxu0 0.0
  %1410 = vmatpush1.msra.mxu0 0.0
  %1411 = vmatprep.subr.mxu0 0.0
  %1412 = vmatpush1.msra.mxu0 0.0
  %1413 = vmatprep.subr.mxu0 0.0
  %1414 = vmatpush1.msra.mxu0 0.0
  %1415 = vmatprep.subr.mxu0 0.0
  %1416 = vmatpush1.msra.mxu0 0.0
  %1417 = vmatprep.subr.mxu0 0.0
  %1418 = vmatpush1.msra.mxu0 0.0
  %1419 = vmatprep.subr.mxu0 0.0
  %1420 = vmatpush1.msra.mxu0 0.0
  %1421 = vmatprep.subr.mxu0 0.0
  %1422 = vmatpush1.msra.mxu0 0.0
  %1423 = vmatprep.subr.mxu0 0.0
  %1424 = vmatpush1.msra.mxu0 0.0
  %1425 = vmatprep.subr.mxu0 0.0
  %1426 = vmatpush1.msra.mxu0 0.0
  %1427 = vmatprep.subr.mxu0 0.0
  %1428 = vmatpush1.msra.mxu0 0.0
  %1429 = vmatprep.subr.mxu0 0.0
  %1430 = vmatpush1.msra.mxu0 0.0
  %1431 = vmatprep.subr.mxu0 0.0
  %1432 = vmatpush1.msra.mxu0 0.0
  %1433 = vmatprep.subr.mxu0 0.0
  %1434 = vmatpush1.msra.mxu0 0.0
  %1435 = vmatprep.subr.mxu0 0.0
  %1436 = vmatpush1.msra.mxu0 %v1401
  %1437 = vmatprep.subr.mxu0 0.0
  %1438 = vmatpush2.msra.mxu0 0.0
  %1439 = vmatprep.subr.mxu0 0.0
  %1440 = vmatpush2.msra.mxu0 0.0
  %1441 = vmatprep.subr.mxu0 0.0
  %1442 = vmatpush2.msra.mxu0 0.0
  %1443 = vmatprep.subr.mxu0 0.0
  %1444 = vmatpush2.msra.mxu0 0.0
  %1445 = vmatprep.subr.mxu0 0.0
  %1446 = vmatpush2.msra.mxu0 0.0
  %1447 = vmatprep.subr.mxu0 0.0
  %1448 = vmatpush2.msra.mxu0 0.0
  %1449 = vmatprep.subr.mxu0 0.0
  %1450 = vmatpush2.msra.mxu0 0.0
  %1451 = vmatprep.subr.mxu0 0.0
  %1452 = vmatpush2.msra.mxu0 0.0
  %1453 = vmatprep.subr.mxu0 0.0
  %1454 = vmatpush2.msra.mxu0 0.0
  %1455 = vmatprep.subr.mxu0 0.0
  %1456 = vmatpush2.msra.mxu0 0.0
  %1457 = vmatprep.subr.mxu0 0.0
  %1458 = vmatpush2.msra.mxu0 0.0
  %1459 = vmatprep.subr.mxu0 0.0
  %1460 = vmatpush2.msra.mxu0 0.0
  %1461 = vmatprep.subr.mxu0 0.0
  %1462 = vmatpush2.msra.mxu0 0.0
  %1463 = vmatprep.subr.mxu0 0.0
  %1464 = vmatpush2.msra.mxu0 0.0
  %1465 = vmatprep.subr.mxu0 0.0
  %1466 = vmatpush2.msra.mxu0 0.0
  %1467 = vmatprep.subr.mxu0 0.0
  %1468 = vmatpush2.msra.mxu0 0.0
  %1469 = vmatprep.mubr.f32.mxu0 0.0
  %1470 = vmatmul.mubr.f32.gmra.mxu0 %v1403
  %v1471 = vpop.f32.mrf.mxu0
  %v1472 = vadd.f32 0.0, %v1471
  %v1473 = vpop.f32.mrf.mxu0
  %1474 = vdwg.mxu0
  %1475 = vrot.lane.b32.xlu0 %v832, 72
  %v1476 = vpop.permute.xlu0 %1475
  %v1478 = vsub.f32 %v1472, %v1476
  %1480 = vrot.lane.b32.xlu0 %v1478, 120
  %v1481 = vpop.permute.xlu0 %1480
  %vm1483 = vcmask 31744
  %1484 = vst.msk [vmem:[#allocation3] sm:$0xff] %vm1483, %v1481
  %v1485 = vld [vmem:[#allocation3] sm:$0xff]
  %1486 = vxpose.xlu0.b32.start [1/16] %v1485, 128
  %1487 = vxpose.xlu0.b32.cont [2/16] 0.0, 128
  %1488 = vxpose.xlu0.b32.cont [3/16] 0.0, 128
  %1489 = vxpose.xlu0.b32.cont [4/16] 0.0, 128
  %1490 = vxpose.xlu0.b32.cont [5/16] 0.0, 128
  %1491 = vxpose.xlu0.b32.cont [6/16] 0.0, 128
  %1492 = vxpose.xlu0.b32.cont [7/16] 0.0, 128
  %1493 = vxpose.xlu0.b32.cont [8/16] 0.0, 128
  %1494 = vxpose.xlu0.b32.cont [9/16] 0.0, 128
  %1495 = vxpose.xlu0.b32.cont [10/16] 0.0, 128
  %1496 = vxpose.xlu0.b32.cont [11/16] 0.0, 128
  %1497 = vxpose.xlu0.b32.cont [12/16] 0.0, 128
  %1498 = vxpose.xlu0.b32.cont [13/16] 0.0, 128
  %1499 = vxpose.xlu0.b32.cont [14/16] 0.0, 128
  %1500 = vxpose.xlu0.b32.cont [15/16] 0.0, 128
  %1501 = vxpose.xlu0.b32.end [16/16] 0.0, 128
  %v1502 = vpop.trf.xlu0
  %v1503 = vpop.trf.xlu0
  %v1504 = vpop.trf.xlu0
  %v1505 = vpop.trf.xlu0
  %v1506 = vpop.trf.xlu0
  %v1507 = vpop.trf.xlu0
  %v1508 = vpop.trf.xlu0
  %v1509 = vpop.trf.xlu0
  %v1510 = vpop.trf.xlu0
  %v1511 = vpop.trf.xlu0
  %v1512 = vpop.trf.xlu0
  %v1513 = vpop.trf.xlu0
  %v1514 = vpop.trf.xlu0
  %v1515 = vpop.trf.xlu0
  %v1516 = vpop.trf.xlu0
  %v1517 = vpop.trf.xlu0
  %v1519 = vsel %vm19, %v1502, 0
  %v1522 = vsel %vm19, %v1503, 0
  %v1525 = vsel %vm19, %v1504, 0
  %v1528 = vsel %vm19, %v1505, 0
  %v1531 = vsel %vm19, %v1506, 0
  %1533 = vmatprep.subr.mxu0 0.0
  %1534 = vmatpush1.msra.mxu0 0.0
  %1535 = vmatprep.subr.mxu0 0.0
  %1536 = vmatpush1.msra.mxu0 0.0
  %1537 = vmatprep.subr.mxu0 0.0
  %1538 = vmatpush1.msra.mxu0 0.0
  %1539 = vmatprep.subr.mxu0 0.0
  %1540 = vmatpush1.msra.mxu0 0.0
  %1541 = vmatprep.subr.mxu0 0.0
  %1542 = vmatpush1.msra.mxu0 0.0
  %1543 = vmatprep.subr.mxu0 0.0
  %1544 = vmatpush1.msra.mxu0 0.0
  %1545 = vmatprep.subr.mxu0 0.0
  %1546 = vmatpush1.msra.mxu0 0.0
  %1547 = vmatprep.subr.mxu0 0.0
  %1548 = vmatpush1.msra.mxu0 0.0
  %1549 = vmatprep.subr.mxu0 0.0
  %1550 = vmatpush1.msra.mxu0 0.0
  %1551 = vmatprep.subr.mxu0 0.0
  %1552 = vmatpush1.msra.mxu0 0.0
  %1553 = vmatprep.subr.mxu0 0.0
  %1554 = vmatpush1.msra.mxu0 0.0
  %1555 = vmatprep.subr.mxu0 0.0
  %1556 = vmatpush1.msra.mxu0 0.0
  %1557 = vmatprep.subr.mxu0 0.0
  %1558 = vmatpush1.msra.mxu0 0.0
  %1559 = vmatprep.subr.mxu0 0.0
  %1560 = vmatpush1.msra.mxu0 0.0
  %1561 = vmatprep.subr.mxu0 0.0
  %1562 = vmatpush1.msra.mxu0 0.0
  %1563 = vmatprep.subr.mxu0 0.0
  %1564 = vmatpush1.msra.mxu0 %v724
  %1565 = vmatprep.subr.mxu0 0.0
  %1566 = vmatpush2.msra.mxu0 0.0
  %1567 = vmatprep.subr.mxu0 0.0
  %1568 = vmatpush2.msra.mxu0 0.0
  %1569 = vmatprep.subr.mxu0 0.0
  %1570 = vmatpush2.msra.mxu0 0.0
  %1571 = vmatprep.subr.mxu0 0.0
  %1572 = vmatpush2.msra.mxu0 0.0
  %1573 = vmatprep.subr.mxu0 0.0
  %1574 = vmatpush2.msra.mxu0 0.0
  %1575 = vmatprep.subr.mxu0 0.0
  %1576 = vmatpush2.msra.mxu0 0.0
  %1577 = vmatprep.subr.mxu0 0.0
  %1578 = vmatpush2.msra.mxu0 0.0
  %1579 = vmatprep.subr.mxu0 0.0
  %1580 = vmatpush2.msra.mxu0 0.0
  %1581 = vmatprep.subr.mxu0 0.0
  %1582 = vmatpush2.msra.mxu0 0.0
  %1583 = vmatprep.subr.mxu0 0.0
  %1584 = vmatpush2.msra.mxu0 0.0
  %1585 = vmatprep.subr.mxu0 0.0
  %1586 = vmatpush2.msra.mxu0 0.0
  %1587 = vmatprep.subr.mxu0 0.0
  %1588 = vmatpush2.msra.mxu0 0.0
  %1589 = vmatprep.subr.mxu0 0.0
  %1590 = vmatpush2.msra.mxu0 0.0
  %1591 = vmatprep.subr.mxu0 0.0
  %1592 = vmatpush2.msra.mxu0 0.0
  %1593 = vmatprep.subr.mxu0 0.0
  %1594 = vmatpush2.msra.mxu0 0.0
  %1595 = vmatprep.subr.mxu0 0.0
  %1596 = vmatpush2.msra.mxu0 0.0
  %1597 = vmatprep.mubr.f32.mxu0 0.0
  %1598 = vmatmul.mubr.f32.gmra.mxu0 %v1519
  %v1599 = vpop.f32.mrf.mxu0
  %v1600 = vadd.f32 0.0, %v1599
  %v1601 = vpop.f32.mrf.mxu0
  %1602 = vmatprep.mubr.f32.mxu0 0.0
  %1603 = vmatmul.mubr.f32.gmra.mxu0 %v1522
  %v1604 = vpop.f32.mrf.mxu0
  %v1605 = vadd.f32 0.0, %v1604
  %v1606 = vpop.f32.mrf.mxu0
  %1607 = vmatprep.mubr.f32.mxu0 0.0
  %1608 = vmatmul.mubr.f32.gmra.mxu0 %v1525
  %v1609 = vpop.f32.mrf.mxu0
  %v1610 = vadd.f32 0.0, %v1609
  %v1611 = vpop.f32.mrf.mxu0
  %1612 = vmatprep.mubr.f32.mxu0 0.0
  %1613 = vmatmul.mubr.f32.gmra.mxu0 %v1528
  %v1614 = vpop.f32.mrf.mxu0
  %v1615 = vadd.f32 0.0, %v1614
  %v1616 = vpop.f32.mrf.mxu0
  %1617 = vmatprep.mubr.f32.mxu0 0.0
  %1618 = vmatmul.mubr.f32.gmra.mxu0 %v1531
  %v1619 = vpop.f32.mrf.mxu0
  %v1620 = vadd.f32 0.0, %v1619
  %v1621 = vpop.f32.mrf.mxu0
  %1622 = vdwg.mxu0
  %v1623 = vmul.f32 %v1600, 0.125
  %v1624 = vmul.f32 %v1605, 0.125
  %v1625 = vmul.f32 %v1610, 0.125
  %v1626 = vmul.f32 %v1615, 0.125
  %v1627 = vmul.f32 %v1620, 0.125
  %1628 = vst [vmem:[%s3] sm:$0xff] %v1623
  %1629 = vst [vmem:[%s3 + $0x8] sm:$0xff] %v1624
  %1630 = vst [vmem:[%s3 + $0x10] sm:$0xff] %v1625
  %1631 = vst [vmem:[%s3 + $0x18] sm:$0xff] %v1626
  %1632 = vst [vmem:[%s3 + $0x20] sm:$0xff] %v1627
  // Predicated region
  $region14: #{monte_carlo_svg.1} parent=0 // pred_check
    _
  $region15: #{monte_carlo_svg.1} parent=0 // pred_check_branch
    %1634 = sbr.rel (0) target = $region17
  $region16: #{monte_carlo_svg.1} parent=0 // pred_region
    _
  $region17: #{monte_carlo_svg.1} parent=0 // pred_fallthru
    _
  // Predicated region
  $region18: #{monte_carlo_svg.1} parent=0 // pred_check
    _
  $region19: #{monte_carlo_svg.1} parent=0 // pred_check_branch
    %1636 = sbr.rel (0) target = $region21
  $region20: #{monte_carlo_svg.1} parent=0 // pred_region
    _
  $region21: #{monte_carlo_svg.1} parent=0 // pred_fallthru
    _

</llo_original>
